<compile_context>
chip_gen: v5e
topology: v5e:2x2
jax: 0.10.0
libtpu: 0.0.40
codegen_flags: <defaults>
</compile_context>

<pallas_src>
import jax
import jax.numpy as jnp
from jax.experimental import pallas as pl
from jax.experimental.pallas import tpu as pltpu

LEAKY_SLOPE = 0.01  # nn.LeakyReLU default negative_slope
LANE = 128
SUBLANE = 8


def _round_up(n, m):
    return ((n + m - 1) // m) * m


def _leaky_relu(x):
    return jnp.where(x >= 0, x, LEAKY_SLOPE * x)


def _pipeline_mode_supported():
    """Build-time check: does this jax expose pl.Buffered + BlockSpec(pipeline_mode=)?"""
    if not hasattr(pl, "Buffered"):
        return False
    try:
        pl.BlockSpec((SUBLANE, LANE), lambda i: (i, 0), pipeline_mode=pl.Buffered(1))
        return True
    except Exception:
        return False


_PIPELINE_MODE_SUPPORTED = _pipeline_mode_supported()


def _mlp_kernel(x_ref,
                w1_ref, b1_ref,
                w2_ref, b2_ref,
                w3_ref, b3_ref,
                w4_ref, b4_ref,
                w5_ref, b5_ref,
                o_ref):
    """One batch tile through all 5 layers.

    Matmuls run on the MXU in the weight storage dtype (bf16 by default) with
    f32 accumulation; bias add and LeakyReLU stay in f32 on the VPU.
    """
    compute_dtype = w1_ref.dtype

    def layer(h, w_ref, b_ref, *, activate):
        y = jnp.dot(h, w_ref[...], preferred_element_type=jnp.float32)
        y = y + b_ref[...]                      # (1, N) f32 bias broadcasts over rows
        if activate:
            y = _leaky_relu(y)                  # f32 elementwise
            return y.astype(compute_dtype)      # back to MXU dtype for the next layer
        return y

    # f32 HBM stream; cast to the MXU dtype in-kernel (no wrapper pad/cast pass).
    h = x_ref[...].astype(compute_dtype)
    h = layer(h, w1_ref, b1_ref, activate=True)
    h = layer(h, w2_ref, b2_ref, activate=True)
    h = layer(h, w3_ref, b3_ref, activate=True)
    h = layer(h, w4_ref, b4_ref, activate=True)
    o_ref[...] = layer(h, w5_ref, b5_ref, activate=False).astype(o_ref.dtype)


def discriminator_forward(x, params, *, batch_tile=512, use_bf16=True):
    """x: (B, input_size) float32.  params: list of 5 (W, b), W shaped (in, out).

    Returns (B, output_size) float32 with the same semantics as the torch module
    (up to bf16 matmul rounding when use_bf16=True).
    """
    B, in_features = x.shape
    hidden = params[0][0].shape[1]
    out_features = params[-1][0].shape[1]
    compute_dtype = jnp.bfloat16 if use_bf16 else jnp.float32

    # ---- weight padding (trace-time, weights only): hidden dims -> 128-lane
    #      multiples; layer-1 in-dim and layer-5 out-dim stay exact so x and the
    #      output need no wrapper-side pad/slice HBM passes. ----
    hid_p = _round_up(hidden, LANE)
    padded_dims = [(in_features, hid_p), (hid_p, hid_p), (hid_p, hid_p),
                   (hid_p, hid_p), (hid_p, out_features)]
    flat_params = []
    for (w, b), (di, do) in zip(params, padded_dims):
        fi, fo = w.shape
        if (fi, fo) == (di, do):
            w_p = w.astype(compute_dtype)
        else:
            w_p = jnp.zeros((di, do), compute_dtype).at[:fi, :fo].set(
                w.astype(compute_dtype))
        if fo == do:
            b_p = b.astype(jnp.float32).reshape(1, do)
        else:
            b_p = jnp.zeros((1, do), jnp.float32).at[0, :fo].set(
                b.astype(jnp.float32))
        flat_params += [w_p, b_p]

    # ---- batch tiling: large tiles amortize the ~0.35 us/step overhead, but
    #      keep >=2 grid tiles when the batch allows so v7x's two TensorCores
    #      both get work from the single "parallel" batch axis. ----
    batch_tile = max(SUBLANE, _round_up(int(batch_tile), SUBLANE))
    if B > SUBLANE:
        batch_tile = min(batch_tile, _round_up(pl.cdiv(B, 2), SUBLANE))
    n_tiles = pl.cdiv(B, batch_tile)

    # ---- generation-aware VMEM budget ----
    try:
        vmem_capacity = int(pltpu.get_tpu_info().vmem_capacity_bytes)
    except Exception:
        vmem_capacity = 64 * 2**20          # conservative (v7x per-TC) fallback
    vmem_headroom = max(32 << 20, vmem_capacity - (16 << 20))  # compiler scratch headroom

    param_bytes = sum(int(p.size) * p.dtype.itemsize for p in flat_params)
    x_bufs = 3 if n_tiles >= 3 else 2       # deeper pipeline on the streaming input
    x_tile_bytes = batch_tile * in_features * x.dtype.itemsize
    out_tile_bytes = batch_tile * out_features * 4
    act_bytes = 6 * batch_tile * max(hid_p, in_features, out_features) * 4
    needed_single = (param_bytes + x_bufs * x_tile_bytes + 2 * out_tile_bytes
                     + act_bytes + (4 << 20))
    if needed_single > vmem_headroom:
        # TODO(synk): tile the hidden dim (extra 'arbitrary' grid axis with a
        # pl.when-initialized f32 accumulator) instead of keeping whole HxH weights
        # resident; needed once hidden_size reaches ~2048 on v7x's 64 MiB VMEM.
        raise ValueError("hidden_size too large for the fully-resident-weight kernel")
    # Budget so even the (double-buffered-weights) fallback build has room.
    vmem_limit = int(min(vmem_headroom, max(32 << 20, needed_single + param_bytes)))

    flops = 2 * B * (in_features * hid_p + 3 * hid_p * hid_p + hid_p * out_features)
    bytes_accessed = (B * in_features * x.dtype.itemsize
                      + B * out_features * 4 + param_bytes)
    cost = pl.CostEstimate(flops=flops, transcendentals=0,
                           bytes_accessed=bytes_accessed)

    def build(weight_mode, x_mode):
        def spec(shape, index_map, mode):
            if mode is None:
                return pl.BlockSpec(shape, index_map)
            return pl.BlockSpec(shape, index_map, pipeline_mode=mode)

        in_specs = [spec((batch_tile, in_features), lambda i: (i, 0), x_mode)]
        in_specs += [spec(p.shape, lambda i: (0, 0), weight_mode)
                     for p in flat_params]
        # Output is exactly (B, out_features): lane-dense useful bytes only,
        # partial last tile masked by Pallas on writeback.
        out_spec = pl.BlockSpec((batch_tile, out_features), lambda i: (i, 0))

        return pl.pallas_call(
            _mlp_kernel,
            out_shape=jax.ShapeDtypeStruct((B, out_features), jnp.float32),
            grid_spec=pltpu.PrefetchScalarGridSpec(
                num_scalar_prefetch=0,
                grid=(n_tiles,),
                in_specs=in_specs,
                out_specs=out_spec,
            ),
            compiler_params=pltpu.CompilerParams(
                dimension_semantics=("parallel",),
                vmem_limit_bytes=vmem_limit,
            ),
            cost_estimate=cost,
        )

    args = (x, *flat_params)
    if _PIPELINE_MODE_SUPPORTED:
        weight_mode = pl.Buffered(1)                       # constant blocks: single-buffer
        x_mode = pl.Buffered(3) if n_tiles >= 3 else None  # deepen only the streamed input
        # AOT compile probe of the pipeline_mode build only.  If the probe fails
        # we run the plain build WITHOUT any except-wrapper, so genuine kernel /
        # VMEM errors still surface instead of being masked.
        try:
            compiled = jax.jit(build(weight_mode, x_mode)).lower(*args).compile()
        except Exception:
            compiled = None
        if compiled is not None:
            return compiled(*args)
    return build(None, None)(*args)


def init_params(key, input_size, hidden_size, output_size):
    """Deterministic init mimicking nn.Linear default: U(-1/sqrt(fan_in), 1/sqrt(fan_in))."""
    sizes = [(input_size, hidden_size),
             (hidden_size, hidden_size),
             (hidden_size, hidden_size),
             (hidden_size, hidden_size),
             (hidden_size, output_size)]
    params = []
    for (fan_in, fan_out) in sizes:
        key, kw, kb = jax.random.split(key, 3)
        bound = 1.0 / jnp.sqrt(fan_in)
        w = jax.random.uniform(kw, (fan_in, fan_out), jnp.float32, -bound, bound)
        b = jax.random.uniform(kb, (fan_out,), jnp.float32, -bound, bound)
        params.append((w, b))
    return params


def reference_forward(x, params, compute_dtype=jnp.float32):
    """Pure-JAX reference with the same numerics as the kernel path."""
    h = x.astype(compute_dtype)
    for i, (w, b) in enumerate(params):
        y = jnp.dot(h, w.astype(compute_dtype),
                    preferred_element_type=jnp.float32) + b.astype(jnp.float32)
        if i < len(params) - 1:
            y = jnp.where(y >= 0, y, LEAKY_SLOPE * y)
            h = y.astype(compute_dtype)
        else:
            h = y
    return h.astype(jnp.float32)


if __name__ == "__main__":
    key = jax.random.PRNGKey(0)
    # Non-multiple-of-tile batch exercises the partial-block masking and the
    # >=2-tile (megacore) split: 300 rows -> 2 tiles of 152/148 rows.
    batch, input_size, hidden_size, output_size = 300, 16, 32, 1

    kx, kp = jax.random.split(key)
    x = jax.random.normal(kx, (batch, input_size), jnp.float32)
    params = init_params(kp, input_size, hidden_size, output_size)

    # bf16-matmul path (default): compare against a reference with matching numerics.
    out = discriminator_forward(x, params, use_bf16=True)
    out = jax.block_until_ready(out)
    assert out.shape == (batch, output_size)
    ref_bf16 = reference_forward(x, params, compute_dtype=jnp.bfloat16)
    assert jnp.allclose(out, ref_bf16, atol=1e-2, rtol=1e-2), "mismatch vs bf16 reference"

    # f32 path: exact torch semantics.
    out_f32 = discriminator_forward(x, params, use_bf16=False)
    out_f32 = jax.block_until_ready(out_f32)
    ref_f32 = reference_forward(x, params, compute_dtype=jnp.float32)
    assert jnp.allclose(out_f32, ref_f32, atol=1e-4, rtol=1e-4), "mismatch vs f32 reference"

    print("KERNEL_OK")
</pallas_src>

<mosaic_0001>
module attributes {stable_mosaic.version = 11 : i64} {
  func.func @_mlp_kernel(%arg0: i32, %arg1: memref<152x16xf32, #tpu.memory_space<vmem>>, %arg2: memref<16x128xbf16, #tpu.memory_space<vmem>>, %arg3: memref<1x128xf32, #tpu.memory_space<vmem>>, %arg4: memref<128x128xbf16, #tpu.memory_space<vmem>>, %arg5: memref<1x128xf32, #tpu.memory_space<vmem>>, %arg6: memref<128x128xbf16, #tpu.memory_space<vmem>>, %arg7: memref<1x128xf32, #tpu.memory_space<vmem>>, %arg8: memref<128x128xbf16, #tpu.memory_space<vmem>>, %arg9: memref<1x128xf32, #tpu.memory_space<vmem>>, %arg10: memref<128x1xbf16, #tpu.memory_space<vmem>>, %arg11: memref<1x1xf32, #tpu.memory_space<vmem>>, %arg12: memref<152x1xf32, #tpu.memory_space<vmem>>) attributes {dimension_semantics = [#tpu.dimension_semantics<parallel>], iteration_bounds = array<i64: 2>, scalar_prefetch = 0 : i64, scratch_operands = 0 : i64, tpu.core_type = #tpu.core_type<tc>, window_params = [{transform_indices = @transform_0, window_bounds = array<i64: 152, 16>}, {pipeline_mode = #tpu.pipeline_mode<synchronous>, transform_indices = @transform_1, window_bounds = array<i64: 16, 128>}, {pipeline_mode = #tpu.pipeline_mode<synchronous>, transform_indices = @transform_2, window_bounds = array<i64: 1, 128>}, {pipeline_mode = #tpu.pipeline_mode<synchronous>, transform_indices = @transform_3, window_bounds = array<i64: 128, 128>}, {pipeline_mode = #tpu.pipeline_mode<synchronous>, transform_indices = @transform_4, window_bounds = array<i64: 1, 128>}, {pipeline_mode = #tpu.pipeline_mode<synchronous>, transform_indices = @transform_5, window_bounds = array<i64: 128, 128>}, {pipeline_mode = #tpu.pipeline_mode<synchronous>, transform_indices = @transform_6, window_bounds = array<i64: 1, 128>}, {pipeline_mode = #tpu.pipeline_mode<synchronous>, transform_indices = @transform_7, window_bounds = array<i64: 128, 128>}, {pipeline_mode = #tpu.pipeline_mode<synchronous>, transform_indices = @transform_8, window_bounds = array<i64: 1, 128>}, {pipeline_mode = #tpu.pipeline_mode<synchronous>, transform_indices = @transform_9, window_bounds = array<i64: 128, 1>}, {pipeline_mode = #tpu.pipeline_mode<synchronous>, transform_indices = @transform_10, window_bounds = array<i64: 1, 1>}, {transform_indices = @transform_11, window_bounds = array<i64: 152, 1>}]} {
    %c0 = arith.constant 0 : index
    %c0_0 = arith.constant 0 : index
    %0 = vector.load %arg1[%c0, %c0_0] : memref<152x16xf32, #tpu.memory_space<vmem>>, vector<152x16xf32>
    %1 = arith.truncf %0 : vector<152x16xf32> to vector<152x16xbf16>
    %c0_1 = arith.constant 0 : index
    %c0_2 = arith.constant 0 : index
    %2 = vector.load %arg2[%c0_1, %c0_2] : memref<16x128xbf16, #tpu.memory_space<vmem>>, vector<16x128xbf16>
    %cst = arith.constant dense<0.000000e+00> : vector<152x128xf32>
    %3 = tpu.matmul %1, %2, %cst {dimension_numbers = #tpu.dot_dimension_numbers<[1], [0], [0], [1], [0, 0, 1, 1], [], []>} : vector<152x16xbf16>, vector<16x128xbf16>, vector<152x128xf32> -> vector<152x128xf32>
    %c0_3 = arith.constant 0 : index
    %c0_4 = arith.constant 0 : index
    %4 = vector.load %arg3[%c0_3, %c0_4] : memref<1x128xf32, #tpu.memory_space<vmem>>, vector<1x128xf32>
    %5 = vector.broadcast %4 : vector<1x128xf32> to vector<152x128xf32>
    %6 = arith.addf %3, %5 : vector<152x128xf32>
    %cst_5 = arith.constant 0.000000e+00 : f32
    %7 = vector.broadcast %cst_5 : f32 to vector<152x128xf32>
    %8 = arith.cmpf oge, %6, %7 : vector<152x128xf32>
    %cst_6 = arith.constant 0.00999999977 : f32
    %9 = vector.broadcast %cst_6 : f32 to vector<152x128xf32>
    %10 = arith.mulf %9, %6 : vector<152x128xf32>
    %11 = arith.select %8, %6, %10 : vector<152x128xi1>, vector<152x128xf32>
    %12 = arith.truncf %11 : vector<152x128xf32> to vector<152x128xbf16>
    %c0_7 = arith.constant 0 : index
    %c0_8 = arith.constant 0 : index
    %13 = vector.load %arg4[%c0_7, %c0_8] : memref<128x128xbf16, #tpu.memory_space<vmem>>, vector<128x128xbf16>
    %cst_9 = arith.constant dense<0.000000e+00> : vector<152x128xf32>
    %14 = tpu.matmul %12, %13, %cst_9 {dimension_numbers = #tpu.dot_dimension_numbers<[1], [0], [0], [1], [0, 0, 1, 1], [], []>} : vector<152x128xbf16>, vector<128x128xbf16>, vector<152x128xf32> -> vector<152x128xf32>
    %c0_10 = arith.constant 0 : index
    %c0_11 = arith.constant 0 : index
    %15 = vector.load %arg5[%c0_10, %c0_11] : memref<1x128xf32, #tpu.memory_space<vmem>>, vector<1x128xf32>
    %16 = vector.broadcast %15 : vector<1x128xf32> to vector<152x128xf32>
    %17 = arith.addf %14, %16 : vector<152x128xf32>
    %cst_12 = arith.constant 0.000000e+00 : f32
    %18 = vector.broadcast %cst_12 : f32 to vector<152x128xf32>
    %19 = arith.cmpf oge, %17, %18 : vector<152x128xf32>
    %cst_13 = arith.constant 0.00999999977 : f32
    %20 = vector.broadcast %cst_13 : f32 to vector<152x128xf32>
    %21 = arith.mulf %20, %17 : vector<152x128xf32>
    %22 = arith.select %19, %17, %21 : vector<152x128xi1>, vector<152x128xf32>
    %23 = arith.truncf %22 : vector<152x128xf32> to vector<152x128xbf16>
    %c0_14 = arith.constant 0 : index
    %c0_15 = arith.constant 0 : index
    %24 = vector.load %arg6[%c0_14, %c0_15] : memref<128x128xbf16, #tpu.memory_space<vmem>>, vector<128x128xbf16>
    %cst_16 = arith.constant dense<0.000000e+00> : vector<152x128xf32>
    %25 = tpu.matmul %23, %24, %cst_16 {dimension_numbers = #tpu.dot_dimension_numbers<[1], [0], [0], [1], [0, 0, 1, 1], [], []>} : vector<152x128xbf16>, vector<128x128xbf16>, vector<152x128xf32> -> vector<152x128xf32>
    %c0_17 = arith.constant 0 : index
    %c0_18 = arith.constant 0 : index
    %26 = vector.load %arg7[%c0_17, %c0_18] : memref<1x128xf32, #tpu.memory_space<vmem>>, vector<1x128xf32>
    %27 = vector.broadcast %26 : vector<1x128xf32> to vector<152x128xf32>
    %28 = arith.addf %25, %27 : vector<152x128xf32>
    %cst_19 = arith.constant 0.000000e+00 : f32
    %29 = vector.broadcast %cst_19 : f32 to vector<152x128xf32>
    %30 = arith.cmpf oge, %28, %29 : vector<152x128xf32>
    %cst_20 = arith.constant 0.00999999977 : f32
    %31 = vector.broadcast %cst_20 : f32 to vector<152x128xf32>
    %32 = arith.mulf %31, %28 : vector<152x128xf32>
    %33 = arith.select %30, %28, %32 : vector<152x128xi1>, vector<152x128xf32>
    %34 = arith.truncf %33 : vector<152x128xf32> to vector<152x128xbf16>
    %c0_21 = arith.constant 0 : index
    %c0_22 = arith.constant 0 : index
    %35 = vector.load %arg8[%c0_21, %c0_22] : memref<128x128xbf16, #tpu.memory_space<vmem>>, vector<128x128xbf16>
    %cst_23 = arith.constant dense<0.000000e+00> : vector<152x128xf32>
    %36 = tpu.matmul %34, %35, %cst_23 {dimension_numbers = #tpu.dot_dimension_numbers<[1], [0], [0], [1], [0, 0, 1, 1], [], []>} : vector<152x128xbf16>, vector<128x128xbf16>, vector<152x128xf32> -> vector<152x128xf32>
    %c0_24 = arith.constant 0 : index
    %c0_25 = arith.constant 0 : index
    %37 = vector.load %arg9[%c0_24, %c0_25] : memref<1x128xf32, #tpu.memory_space<vmem>>, vector<1x128xf32>
    %38 = vector.broadcast %37 : vector<1x128xf32> to vector<152x128xf32>
    %39 = arith.addf %36, %38 : vector<152x128xf32>
    %cst_26 = arith.constant 0.000000e+00 : f32
    %40 = vector.broadcast %cst_26 : f32 to vector<152x128xf32>
    %41 = arith.cmpf oge, %39, %40 : vector<152x128xf32>
    %cst_27 = arith.constant 0.00999999977 : f32
    %42 = vector.broadcast %cst_27 : f32 to vector<152x128xf32>
    %43 = arith.mulf %42, %39 : vector<152x128xf32>
    %44 = arith.select %41, %39, %43 : vector<152x128xi1>, vector<152x128xf32>
    %45 = arith.truncf %44 : vector<152x128xf32> to vector<152x128xbf16>
    %c0_28 = arith.constant 0 : index
    %c0_29 = arith.constant 0 : index
    %46 = vector.load %arg10[%c0_28, %c0_29] : memref<128x1xbf16, #tpu.memory_space<vmem>>, vector<128x1xbf16>
    %cst_30 = arith.constant dense<0.000000e+00> : vector<152x1xf32>
    %47 = tpu.matmul %45, %46, %cst_30 {dimension_numbers = #tpu.dot_dimension_numbers<[1], [0], [0], [1], [0, 0, 1, 1], [], []>} : vector<152x128xbf16>, vector<128x1xbf16>, vector<152x1xf32> -> vector<152x1xf32>
    %c0_31 = arith.constant 0 : index
    %c0_32 = arith.constant 0 : index
    %48 = vector.load %arg11[%c0_31, %c0_32] : memref<1x1xf32, #tpu.memory_space<vmem>>, vector<1x1xf32>
    %49 = vector.broadcast %48 : vector<1x1xf32> to vector<152x1xf32>
    %50 = arith.addf %47, %49 : vector<152x1xf32>
    %c0_33 = arith.constant 0 : index
    %c0_34 = arith.constant 0 : index
    %51 = vector.load %arg12[%c0_33, %c0_34] : memref<152x1xf32, #tpu.memory_space<vmem>>, vector<152x1xf32>
    tpu.vector_store %arg12[%c0_33, %c0_34], %50 {strides = array<i32>} : memref<152x1xf32, #tpu.memory_space<vmem>>, vector<152x1xf32>,
    return
  }
  func.func @transform_0(%arg0: i32) -> (i32, i32) {
    %c0_i32 = arith.constant 0 : i32
    %c0_i32_0 = arith.constant 0 : i32
    return %arg0, %c0_i32 : i32, i32
  }
  func.func @transform_1(%arg0: i32) -> (i32, i32) {
    %c0_i32 = arith.constant 0 : i32
    %c0_i32_0 = arith.constant 0 : i32
    %c0_i32_1 = arith.constant 0 : i32
    return %c0_i32, %c0_i32_0 : i32, i32
  }
  func.func @transform_2(%arg0: i32) -> (i32, i32) {
    %c0_i32 = arith.constant 0 : i32
    %c0_i32_0 = arith.constant 0 : i32
    %c0_i32_1 = arith.constant 0 : i32
    return %c0_i32, %c0_i32_0 : i32, i32
  }
  func.func @transform_3(%arg0: i32) -> (i32, i32) {
    %c0_i32 = arith.constant 0 : i32
    %c0_i32_0 = arith.constant 0 : i32
    %c0_i32_1 = arith.constant 0 : i32
    return %c0_i32, %c0_i32_0 : i32, i32
  }
  func.func @transform_4(%arg0: i32) -> (i32, i32) {
    %c0_i32 = arith.constant 0 : i32
    %c0_i32_0 = arith.constant 0 : i32
    %c0_i32_1 = arith.constant 0 : i32
    return %c0_i32, %c0_i32_0 : i32, i32
  }
  func.func @transform_5(%arg0: i32) -> (i32, i32) {
    %c0_i32 = arith.constant 0 : i32
    %c0_i32_0 = arith.constant 0 : i32
    %c0_i32_1 = arith.constant 0 : i32
    return %c0_i32, %c0_i32_0 : i32, i32
  }
  func.func @transform_6(%arg0: i32) -> (i32, i32) {
    %c0_i32 = arith.constant 0 : i32
    %c0_i32_0 = arith.constant 0 : i32
    %c0_i32_1 = arith.constant 0 : i32
    return %c0_i32, %c0_i32_0 : i32, i32
  }
  func.func @transform_7(%arg0: i32) -> (i32, i32) {
    %c0_i32 = arith.constant 0 : i32
    %c0_i32_0 = arith.constant 0 : i32
    %c0_i32_1 = arith.constant 0 : i32
    return %c0_i32, %c0_i32_0 : i32, i32
  }
  func.func @transform_8(%arg0: i32) -> (i32, i32) {
    %c0_i32 = arith.constant 0 : i32
    %c0_i32_0 = arith.constant 0 : i32
    %c0_i32_1 = arith.constant 0 : i32
    return %c0_i32, %c0_i32_0 : i32, i32
  }
  func.func @transform_9(%arg0: i32) -> (i32, i32) {
    %c0_i32 = arith.constant 0 : i32
    %c0_i32_0 = arith.constant 0 : i32
    %c0_i32_1 = arith.constant 0 : i32
    return %c0_i32, %c0_i32_0 : i32, i32
  }
  func.func @transform_10(%arg0: i32) -> (i32, i32) {
    %c0_i32 = arith.constant 0 : i32
    %c0_i32_0 = arith.constant 0 : i32
    %c0_i32_1 = arith.constant 0 : i32
    return %c0_i32, %c0_i32_0 : i32, i32
  }
  func.func @transform_11(%arg0: i32) -> (i32, i32) {
    %c0_i32 = arith.constant 0 : i32
    %c0_i32_0 = arith.constant 0 : i32
    return %arg0, %c0_i32 : i32, i32
  }
}

</mosaic_0001>

<llo_original>
// kernel: tpu_custom_call.1
$region0: #{tpu_custom_call.1}
  #allocation0 [shape = 'u32[]', space=smem, size = 0x4, offset = 0x4, fixed_abs, tag = 'smem constant byte address 0x4 - core index']
  #allocation1 [shape = 'u32[72,128]{1,0:T(1,128)}', space=vmem, size = 0x9000, scoped, tag = 'internal scratch']
  #allocation2 [shape = 'f32[1,1]{1,0:T(1,128)S(1)}', space=vmem, size = 0x200, scoped, tag = 'scoped memory for tpu_custom_call.1']
  %s0 = inlined_call_operand.vmem [shape: f32[300,16], index: 0, kind: input, shape index: {}]
  %s1 = inlined_call_operand.vmem [shape: bf16[16,128], index: 1, kind: input, shape index: {}]
  %s2 = inlined_call_operand.vmem [shape: f32[1,128], index: 2, kind: input, shape index: {}]
  %s3 = inlined_call_operand.vmem [shape: bf16[128,128], index: 3, kind: input, shape index: {}]
  %s4 = inlined_call_operand.vmem [shape: f32[1,128], index: 4, kind: input, shape index: {}]
  %s5 = inlined_call_operand.vmem [shape: bf16[128,128], index: 5, kind: input, shape index: {}]
  %s6 = inlined_call_operand.vmem [shape: f32[1,128], index: 6, kind: input, shape index: {}]
  %s7 = inlined_call_operand.vmem [shape: bf16[128,128], index: 7, kind: input, shape index: {}]
  %s8 = inlined_call_operand.vmem [shape: f32[1,128], index: 8, kind: input, shape index: {}]
  %s9 = inlined_call_operand.vmem [shape: bf16[128,1], index: 9, kind: input, shape index: {}]
  %s10 = inlined_call_operand.<no memory space> [shape: f32[1,1], index: 10, kind: input, shape index: {}]
  %s11 = inlined_call_operand.vmem [shape: f32[300,1], index: 11, kind: output, shape index: {}]
  %s12 = sld [smem:[#allocation0]]
  $region77: #{tpu_custom_call.1} parent=0
    _
  %s14 = ssub.s32 1, %s12
  %s15 = scalar_select 0, %s14, %s12
  %v16 = vstv %s10
  %17 = vst [vmem:[#allocation2] sm:$0x1] %v16
  loop: start=0, step=1, limit=4
  $region2: #{tpu_custom_call.1} parent=0 // loop_pre_header
    _
  $region3: #{tpu_custom_call.1} parent=0 // loop_header
    %s19 = sphi 0, %s23
    %p20 = scmp.ge.s32.totalorder %s19, 4
    %s29 = sphi 0, %s31
    %s32 = sphi 0, %s29
    %s33 = sphi 0, %s32
    %s49 = sphi 0, %s33
    %s53 = sphi 0, %s53
    %s55 = sphi 0, %s53
    %s56 = sphi 0, %s55
    %s70 = sphi 0, %s56
    %s74 = sphi 0, %s74
    %s76 = sphi 0, %s74
    %s77 = sphi 0, %s76
    %s91 = sphi 0, %s77
    %s95 = sphi 0, %s95
    %s97 = sphi 0, %s95
    %s98 = sphi 0, %s97
    %s112 = sphi 0, %s98
    %s116 = sphi 0, %s116
    %s118 = sphi 0, %s116
    %s119 = sphi 0, %s118
    %s133 = sphi 0, %s119
    %s137 = sphi 0, %s137
    %s139 = sphi 0, %s137
    %s140 = sphi 0, %s139
    %s154 = sphi 0, %s140
    %s158 = sphi 0, %s158
    %s160 = sphi 0, %s158
    %s161 = sphi 0, %s160
    %s175 = sphi 0, %s161
    %s179 = sphi 0, %s179
    %s181 = sphi 0, %s179
    %s182 = sphi 0, %s181
    %s196 = sphi 0, %s182
    %s200 = sphi 0, %s200
    %s202 = sphi 0, %s200
    %s203 = sphi 0, %s202
    %s217 = sphi 0, %s203
    %s221 = sphi 0, %s221
    %s223 = sphi 0, %s221
    %s224 = sphi 0, %s223
    %s238 = sphi 0, %s224
    %s242 = sphi 0, %s242
    %s244 = sphi 0, %s242
    %s245 = sphi 0, %s244
    %s259 = sphi 0, %s245
    %s265 = sphi 0, %s267
    %s268 = sphi 0, %s265
    %s269 = sphi 0, %s268
    %s285 = sphi 0, %s269
  $region4: #{tpu_custom_call.1} parent=0 // loop_header_branch
    %22 = sbr.rel (%p20) target = $region8
  $region5: #{tpu_custom_call.1} parent=0 // loop_body
    %s24 = ssub.s32 %s19, 1
    %s25 = ssub.s32 %s19, 2
    %s26 = sadd.s32 %s19, 1
    %s27 = ssub.s32 %s19, %s26
    %p28 = scmp.eq.s32.totalorder %s27, 0
    %s30 = sadd.s32 %s29, 1
    %s31 = scalar_select %p28, %s29, %s30
    %p34 = pneg %p28
    %p35 = scmp.eq.s32.totalorder %s19, 1
    %p36 = por %p34, %p35
    %p37 = scmp.ne.s32.totalorder %s29, %s32
    %p38 = scmp.eq.s32.totalorder %s19, 0
    %p39 = por %p37, %p38
    %p40 = scmp.ne.s32.totalorder %s29, %s32
    %p41 = scmp.eq.s32.totalorder %s24, 1
    %p42 = por %p40, %p41
    %p43 = scmp.ne.s32.totalorder %s32, %s33
    %p44 = scmp.eq.s32.totalorder %s24, 0
    %p45 = por %p43, %p44
    %p46 = scmp.ne.s32.totalorder %s32, %s33
    %p47 = scmp.eq.s32.totalorder %s25, 1
    %p48 = por %p46, %p47
    %p50 = scmp.ne.s32.totalorder %s33, %s49
    %p51 = scmp.eq.s32.totalorder %s25, 0
    %p52 = por %p50, %p51
    %s54 = sadd.s32 %s53, 1
    %p57 = scmp.eq.s32.totalorder %s19, 1
    %p58 = scmp.ne.s32.totalorder %s53, %s55
    %p59 = scmp.eq.s32.totalorder %s19, 0
    %p60 = por %p58, %p59
    %p61 = scmp.ne.s32.totalorder %s53, %s55
    %p62 = scmp.eq.s32.totalorder %s24, 1
    %p63 = por %p61, %p62
    %p64 = scmp.ne.s32.totalorder %s55, %s56
    %p65 = scmp.eq.s32.totalorder %s24, 0
    %p66 = por %p64, %p65
    %p67 = scmp.ne.s32.totalorder %s55, %s56
    %p68 = scmp.eq.s32.totalorder %s25, 1
    %p69 = por %p67, %p68
    %p71 = scmp.ne.s32.totalorder %s56, %s70
    %p72 = scmp.eq.s32.totalorder %s25, 0
    %p73 = por %p71, %p72
    %s75 = sadd.s32 %s74, 1
    %p78 = scmp.eq.s32.totalorder %s19, 1
    %p79 = scmp.ne.s32.totalorder %s74, %s76
    %p80 = scmp.eq.s32.totalorder %s19, 0
    %p81 = por %p79, %p80
    %p82 = scmp.ne.s32.totalorder %s74, %s76
    %p83 = scmp.eq.s32.totalorder %s24, 1
    %p84 = por %p82, %p83
    %p85 = scmp.ne.s32.totalorder %s76, %s77
    %p86 = scmp.eq.s32.totalorder %s24, 0
    %p87 = por %p85, %p86
    %p88 = scmp.ne.s32.totalorder %s76, %s77
    %p89 = scmp.eq.s32.totalorder %s25, 1
    %p90 = por %p88, %p89
    %p92 = scmp.ne.s32.totalorder %s77, %s91
    %p93 = scmp.eq.s32.totalorder %s25, 0
    %p94 = por %p92, %p93
    %s96 = sadd.s32 %s95, 1
    %p99 = scmp.eq.s32.totalorder %s19, 1
    %p100 = scmp.ne.s32.totalorder %s95, %s97
    %p101 = scmp.eq.s32.totalorder %s19, 0
    %p102 = por %p100, %p101
    %p103 = scmp.ne.s32.totalorder %s95, %s97
    %p104 = scmp.eq.s32.totalorder %s24, 1
    %p105 = por %p103, %p104
    %p106 = scmp.ne.s32.totalorder %s97, %s98
    %p107 = scmp.eq.s32.totalorder %s24, 0
    %p108 = por %p106, %p107
    %p109 = scmp.ne.s32.totalorder %s97, %s98
    %p110 = scmp.eq.s32.totalorder %s25, 1
    %p111 = por %p109, %p110
    %p113 = scmp.ne.s32.totalorder %s98, %s112
    %p114 = scmp.eq.s32.totalorder %s25, 0
    %p115 = por %p113, %p114
    %s117 = sadd.s32 %s116, 1
    %p120 = scmp.eq.s32.totalorder %s19, 1
    %p121 = scmp.ne.s32.totalorder %s116, %s118
    %p122 = scmp.eq.s32.totalorder %s19, 0
    %p123 = por %p121, %p122
    %p124 = scmp.ne.s32.totalorder %s116, %s118
    %p125 = scmp.eq.s32.totalorder %s24, 1
    %p126 = por %p124, %p125
    %p127 = scmp.ne.s32.totalorder %s118, %s119
    %p128 = scmp.eq.s32.totalorder %s24, 0
    %p129 = por %p127, %p128
    %p130 = scmp.ne.s32.totalorder %s118, %s119
    %p131 = scmp.eq.s32.totalorder %s25, 1
    %p132 = por %p130, %p131
    %p134 = scmp.ne.s32.totalorder %s119, %s133
    %p135 = scmp.eq.s32.totalorder %s25, 0
    %p136 = por %p134, %p135
    %s138 = sadd.s32 %s137, 1
    %p141 = scmp.eq.s32.totalorder %s19, 1
    %p142 = scmp.ne.s32.totalorder %s137, %s139
    %p143 = scmp.eq.s32.totalorder %s19, 0
    %p144 = por %p142, %p143
    %p145 = scmp.ne.s32.totalorder %s137, %s139
    %p146 = scmp.eq.s32.totalorder %s24, 1
    %p147 = por %p145, %p146
    %p148 = scmp.ne.s32.totalorder %s139, %s140
    %p149 = scmp.eq.s32.totalorder %s24, 0
    %p150 = por %p148, %p149
    %p151 = scmp.ne.s32.totalorder %s139, %s140
    %p152 = scmp.eq.s32.totalorder %s25, 1
    %p153 = por %p151, %p152
    %p155 = scmp.ne.s32.totalorder %s140, %s154
    %p156 = scmp.eq.s32.totalorder %s25, 0
    %p157 = por %p155, %p156
    %s159 = sadd.s32 %s158, 1
    %p162 = scmp.eq.s32.totalorder %s19, 1
    %p163 = scmp.ne.s32.totalorder %s158, %s160
    %p164 = scmp.eq.s32.totalorder %s19, 0
    %p165 = por %p163, %p164
    %p166 = scmp.ne.s32.totalorder %s158, %s160
    %p167 = scmp.eq.s32.totalorder %s24, 1
    %p168 = por %p166, %p167
    %p169 = scmp.ne.s32.totalorder %s160, %s161
    %p170 = scmp.eq.s32.totalorder %s24, 0
    %p171 = por %p169, %p170
    %p172 = scmp.ne.s32.totalorder %s160, %s161
    %p173 = scmp.eq.s32.totalorder %s25, 1
    %p174 = por %p172, %p173
    %p176 = scmp.ne.s32.totalorder %s161, %s175
    %p177 = scmp.eq.s32.totalorder %s25, 0
    %p178 = por %p176, %p177
    %s180 = sadd.s32 %s179, 1
    %p183 = scmp.eq.s32.totalorder %s19, 1
    %p184 = scmp.ne.s32.totalorder %s179, %s181
    %p185 = scmp.eq.s32.totalorder %s19, 0
    %p186 = por %p184, %p185
    %p187 = scmp.ne.s32.totalorder %s179, %s181
    %p188 = scmp.eq.s32.totalorder %s24, 1
    %p189 = por %p187, %p188
    %p190 = scmp.ne.s32.totalorder %s181, %s182
    %p191 = scmp.eq.s32.totalorder %s24, 0
    %p192 = por %p190, %p191
    %p193 = scmp.ne.s32.totalorder %s181, %s182
    %p194 = scmp.eq.s32.totalorder %s25, 1
    %p195 = por %p193, %p194
    %p197 = scmp.ne.s32.totalorder %s182, %s196
    %p198 = scmp.eq.s32.totalorder %s25, 0
    %p199 = por %p197, %p198
    %s201 = sadd.s32 %s200, 1
    %p204 = scmp.eq.s32.totalorder %s19, 1
    %p205 = scmp.ne.s32.totalorder %s200, %s202
    %p206 = scmp.eq.s32.totalorder %s19, 0
    %p207 = por %p205, %p206
    %p208 = scmp.ne.s32.totalorder %s200, %s202
    %p209 = scmp.eq.s32.totalorder %s24, 1
    %p210 = por %p208, %p209
    %p211 = scmp.ne.s32.totalorder %s202, %s203
    %p212 = scmp.eq.s32.totalorder %s24, 0
    %p213 = por %p211, %p212
    %p214 = scmp.ne.s32.totalorder %s202, %s203
    %p215 = scmp.eq.s32.totalorder %s25, 1
    %p216 = por %p214, %p215
    %p218 = scmp.ne.s32.totalorder %s203, %s217
    %p219 = scmp.eq.s32.totalorder %s25, 0
    %p220 = por %p218, %p219
    %s222 = sadd.s32 %s221, 1
    %p225 = scmp.eq.s32.totalorder %s19, 1
    %p226 = scmp.ne.s32.totalorder %s221, %s223
    %p227 = scmp.eq.s32.totalorder %s19, 0
    %p228 = por %p226, %p227
    %p229 = scmp.ne.s32.totalorder %s221, %s223
    %p230 = scmp.eq.s32.totalorder %s24, 1
    %p231 = por %p229, %p230
    %p232 = scmp.ne.s32.totalorder %s223, %s224
    %p233 = scmp.eq.s32.totalorder %s24, 0
    %p234 = por %p232, %p233
    %p235 = scmp.ne.s32.totalorder %s223, %s224
    %p236 = scmp.eq.s32.totalorder %s25, 1
    %p237 = por %p235, %p236
    %p239 = scmp.ne.s32.totalorder %s224, %s238
    %p240 = scmp.eq.s32.totalorder %s25, 0
    %p241 = por %p239, %p240
    %s243 = sadd.s32 %s242, 1
    %p246 = scmp.eq.s32.totalorder %s19, 1
    %p247 = scmp.ne.s32.totalorder %s242, %s244
    %p248 = scmp.eq.s32.totalorder %s19, 0
    %p249 = por %p247, %p248
    %p250 = scmp.ne.s32.totalorder %s242, %s244
    %p251 = scmp.eq.s32.totalorder %s24, 1
    %p252 = por %p250, %p251
    %p253 = scmp.ne.s32.totalorder %s244, %s245
    %p254 = scmp.eq.s32.totalorder %s24, 0
    %p255 = por %p253, %p254
    %p256 = scmp.ne.s32.totalorder %s244, %s245
    %p257 = scmp.eq.s32.totalorder %s25, 1
    %p258 = por %p256, %p257
    %p260 = scmp.ne.s32.totalorder %s245, %s259
    %p261 = scmp.eq.s32.totalorder %s25, 0
    %p262 = por %p260, %p261
    %s263 = ssub.s32 %s19, %s26
    %p264 = scmp.eq.s32.totalorder %s263, 0
    %s266 = sadd.s32 %s265, 1
    %s267 = scalar_select %p264, %s265, %s266
    %p270 = pneg %p264
    %p271 = scmp.eq.s32.totalorder %s19, 1
    %p272 = por %p270, %p271
    %p273 = scmp.ne.s32.totalorder %s265, %s268
    %p274 = scmp.eq.s32.totalorder %s19, 0
    %p275 = por %p273, %p274
    %p276 = scmp.ne.s32.totalorder %s265, %s268
    %p277 = scmp.eq.s32.totalorder %s24, 1
    %p278 = por %p276, %p277
    %p279 = scmp.ne.s32.totalorder %s268, %s269
    %p280 = scmp.eq.s32.totalorder %s24, 0
    %p281 = por %p279, %p280
    %p282 = scmp.ne.s32.totalorder %s268, %s269
    %p283 = scmp.eq.s32.totalorder %s25, 1
    %p284 = por %p282, %p283
    %p286 = scmp.ne.s32.totalorder %s269, %s285
    %p287 = scmp.eq.s32.totalorder %s25, 0
    %p288 = por %p286, %p287
    %p289 = scmp.le.s32.totalorder 1, %s19
    %p290 = scmp.lt.s32.totalorder %s19, 3
    %p291 = pnand %p289, %p290
    %p292 = pneg %p291
    // Predicated region
    $region9: #{tpu_custom_call.1} parent=5 // pred_check
      _
    $region10: #{tpu_custom_call.1} parent=5 // pred_check_branch
      %294 = sbr.rel (%p291) target = $region12
    $region11: #{tpu_custom_call.1} parent=5 // pred_region
      %s295 = ssub.s32 %s19, 1
      // Predicated region
      $region13: #{tpu_custom_call.1} parent=11 // pred_check
        %p296 = pneg %p66
      $region14: #{tpu_custom_call.1} parent=11 // pred_check_branch
        %298 = sbr.rel (%p296) target = $region16
      $region15: #{tpu_custom_call.1} parent=11 // pred_region
        _
      $region16: #{tpu_custom_call.1} parent=11 // pred_fallthru
        _
      // Predicated region
      $region17: #{tpu_custom_call.1} parent=11 // pred_check
        %p299 = pneg %p87
      $region18: #{tpu_custom_call.1} parent=11 // pred_check_branch
        %301 = sbr.rel (%p299) target = $region20
      $region19: #{tpu_custom_call.1} parent=11 // pred_region
        _
      $region20: #{tpu_custom_call.1} parent=11 // pred_fallthru
        _
      // Predicated region
      $region21: #{tpu_custom_call.1} parent=11 // pred_check
        %p302 = pneg %p108
      $region22: #{tpu_custom_call.1} parent=11 // pred_check_branch
        %304 = sbr.rel (%p302) target = $region24
      $region23: #{tpu_custom_call.1} parent=11 // pred_region
        _
      $region24: #{tpu_custom_call.1} parent=11 // pred_fallthru
        _
      // Predicated region
      $region25: #{tpu_custom_call.1} parent=11 // pred_check
        %p305 = pneg %p129
      $region26: #{tpu_custom_call.1} parent=11 // pred_check_branch
        %307 = sbr.rel (%p305) target = $region28
      $region27: #{tpu_custom_call.1} parent=11 // pred_region
        _
      $region28: #{tpu_custom_call.1} parent=11 // pred_fallthru
        _
      // Predicated region
      $region29: #{tpu_custom_call.1} parent=11 // pred_check
        %p308 = pneg %p150
      $region30: #{tpu_custom_call.1} parent=11 // pred_check_branch
        %310 = sbr.rel (%p308) target = $region32
      $region31: #{tpu_custom_call.1} parent=11 // pred_region
        _
      $region32: #{tpu_custom_call.1} parent=11 // pred_fallthru
        _
      // Predicated region
      $region33: #{tpu_custom_call.1} parent=11 // pred_check
        %p311 = pneg %p171
      $region34: #{tpu_custom_call.1} parent=11 // pred_check_branch
        %313 = sbr.rel (%p311) target = $region36
      $region35: #{tpu_custom_call.1} parent=11 // pred_region
        _
      $region36: #{tpu_custom_call.1} parent=11 // pred_fallthru
        _
      // Predicated region
      $region37: #{tpu_custom_call.1} parent=11 // pred_check
        %p314 = pneg %p192
      $region38: #{tpu_custom_call.1} parent=11 // pred_check_branch
        %316 = sbr.rel (%p314) target = $region40
      $region39: #{tpu_custom_call.1} parent=11 // pred_region
        _
      $region40: #{tpu_custom_call.1} parent=11 // pred_fallthru
        _
      // Predicated region
      $region41: #{tpu_custom_call.1} parent=11 // pred_check
        %p317 = pneg %p213
      $region42: #{tpu_custom_call.1} parent=11 // pred_check_branch
        %319 = sbr.rel (%p317) target = $region44
      $region43: #{tpu_custom_call.1} parent=11 // pred_region
        _
      $region44: #{tpu_custom_call.1} parent=11 // pred_fallthru
        _
      // Predicated region
      $region45: #{tpu_custom_call.1} parent=11 // pred_check
        %p320 = pneg %p234
      $region46: #{tpu_custom_call.1} parent=11 // pred_check_branch
        %322 = sbr.rel (%p320) target = $region48
      $region47: #{tpu_custom_call.1} parent=11 // pred_region
        _
      $region48: #{tpu_custom_call.1} parent=11 // pred_fallthru
        _
      // Predicated region
      $region49: #{tpu_custom_call.1} parent=11 // pred_check
        %p323 = pneg %p255
      $region50: #{tpu_custom_call.1} parent=11 // pred_check_branch
        %325 = sbr.rel (%p323) target = $region52
      $region51: #{tpu_custom_call.1} parent=11 // pred_region
        _
      $region52: #{tpu_custom_call.1} parent=11 // pred_fallthru
        _
    $region12: #{tpu_custom_call.1} parent=5 // pred_fallthru
      _
    %p326 = scmp.lt.s32.totalorder %s19, 2
    // Predicated region
    $region53: #{tpu_custom_call.1} parent=5 // pred_check
      %p327 = pneg %p326
    $region54: #{tpu_custom_call.1} parent=5 // pred_check_branch
      %329 = sbr.rel (%p327) target = $region56
    $region55: #{tpu_custom_call.1} parent=5 // pred_region
      // Predicated region
      $region57: #{tpu_custom_call.1} parent=55 // pred_check
        %p330 = pneg %p39
      $region58: #{tpu_custom_call.1} parent=55 // pred_check_branch
        %332 = sbr.rel (%p330) target = $region60
      $region59: #{tpu_custom_call.1} parent=55 // pred_region
        %s333 = smul.u32 19, %s19
        %p334 = scmp.lt.s32.totalorder %s333, 37
        %s335 = scalar_select %p334, %s333, 37
        %s336 = smul.addr %s335, 8
        %s337 = scalar_lea.vmem %s0, %s336
        %s338 = smul.u32 19, %s19
      $region60: #{tpu_custom_call.1} parent=55 // pred_fallthru
        _
    $region56: #{tpu_custom_call.1} parent=5 // pred_fallthru
      _
    %p339 = scmp.le.s32.totalorder 1, %s19
    %p340 = scmp.lt.s32.totalorder %s19, 3
    %p341 = pnand %p339, %p340
    %p342 = pneg %p341
    // Predicated region
    $region61: #{tpu_custom_call.1} parent=5 // pred_check
      _
    $region62: #{tpu_custom_call.1} parent=5 // pred_check_branch
      %344 = sbr.rel (%p341) target = $region64
    $region63: #{tpu_custom_call.1} parent=5 // pred_region
      %s345 = ssub.s32 %s19, 1
      %s346 = smul.u32 19, %s24
      %p347 = scmp.lt.s32.totalorder %s346, 37
      %s348 = scalar_select %p347, %s346, 37
      %s349 = smul.addr %s348, 8
      %s350 = scalar_lea.vmem %s0, %s349
      %p351 = pneg %p45
      %p352 = pneg %p42
      %p353 = pneg %p66
      %p354 = pneg %p63
      %p355 = pneg %p87
      %p356 = pneg %p84
      %p357 = pneg %p108
      %p358 = pneg %p105
      %p359 = pneg %p129
      %p360 = pneg %p126
      %p361 = pneg %p150
      %p362 = pneg %p147
      %p363 = pneg %p171
      %p364 = pneg %p168
      %p365 = pneg %p192
      %p366 = pneg %p189
      %p367 = pneg %p213
      %p368 = pneg %p210
      %p369 = pneg %p234
      %p370 = pneg %p231
      %p371 = pneg %p255
      %p372 = pneg %p252
      %p373 = pneg %p281
      %p374 = pneg %p278
      %s375 = smul.u32 19, %s24
      %p376 = scmp.lt.s32.totalorder %s375, 37
      %s377 = scalar_select %p376, %s375, 37
      %s378 = smul.addr %s377, 8
      %s379 = scalar_lea.vmem %s11, %s378
      %s380 = smul.u32 19, %s24
      %p381 = scmp.lt.s32.totalorder %s380, 37
      %s382 = scalar_select %p381, %s380, 37
      %s383 = smul.addr %s382, 8
      %s384 = scalar_lea.vmem %s0, %s383
      %s385 = smul.u32 19, %s24
      %s386 = smul.u32 19, %s24
      %p387 = scmp.lt.s32.totalorder %s386, 37
      %s388 = scalar_select %p387, %s386, 37
      %s389 = smul.addr %s388, 8
      %s390 = scalar_lea.vmem %s11, %s389
      %s391 = smul.u32 19, %s24
      %v393 = vld [vmem:[%s384] sm:$0xff]
      %v394 = vld [vmem:[%s384 + $0x8] sm:$0xff]
      %v395 = vld [vmem:[%s384 + $0x10] sm:$0xff]
      %v396 = vld [vmem:[%s384 + $0x18] sm:$0xff]
      %v397 = vld [vmem:[%s384 + $0x20] sm:$0xff]
      %v398 = vld [vmem:[%s384 + $0x28] sm:$0xff]
      %v399 = vld [vmem:[%s384 + $0x30] sm:$0xff]
      %v400 = vld [vmem:[%s384 + $0x38] sm:$0xff]
      %v401 = vld [vmem:[%s384 + $0x40] sm:$0xff]
      %v402 = vld [vmem:[%s384 + $0x48] sm:$0xff]
      %v403 = vld [vmem:[%s384 + $0x50] sm:$0xff]
      %v404 = vld [vmem:[%s384 + $0x58] sm:$0xff]
      %v405 = vld [vmem:[%s384 + $0x60] sm:$0xff]
      %v406 = vld [vmem:[%s384 + $0x68] sm:$0xff]
      %v407 = vld [vmem:[%s384 + $0x70] sm:$0xff]
      %v408 = vld [vmem:[%s384 + $0x78] sm:$0xff]
      %v409 = vld [vmem:[%s384 + $0x80] sm:$0xff]
      %v410 = vld [vmem:[%s384 + $0x88] sm:$0xff]
      %v411 = vld [vmem:[%s384 + $0x90] sm:$0xff]
      %v412 = vpack.c.bf16 %v394, %v393
      %v413 = vpack.c.bf16 %v396, %v395
      %v414 = vpack.c.bf16 %v398, %v397
      %v415 = vpack.c.bf16 %v400, %v399
      %v416 = vpack.c.bf16 %v402, %v401
      %v417 = vpack.c.bf16 %v404, %v403
      %v418 = vpack.c.bf16 %v406, %v405
      %v419 = vpack.c.bf16 %v408, %v407
      %v420 = vpack.c.bf16 %v410, %v409
      %v421 = vpack.c.bf16 %v411, %v411
      %v422 = vld [vmem:[%s1] sm:$0xf]
      %v423 = vld [vmem:[%s1 + $0x4] sm:$0xf]
      %v424 = vld [vmem:[%s2] sm:$0x1]
      %v426 = vperm.slane %v424, 0
      %v430 = vunpack.c.l.b16 %v422
      %v431 = vunpack.c.l.b16 %v423
      %v432 = vpack.c.b16 %v431, %v430
      %vm434 = vcmask 130048
      %v436 = vsel %vm434, %v412, 0
      %v439 = vsel %vm434, %v413, 0
      %v442 = vsel %vm434, %v414, 0
      %v445 = vsel %vm434, %v415, 0
      %v448 = vsel %vm434, %v416, 0
      %v451 = vsel %vm434, %v417, 0
      %v454 = vsel %vm434, %v418, 0
      %v457 = vsel %vm434, %v419, 0
      %v460 = vsel %vm434, %v420, 0
      %v463 = vsel %vm434, %v421, 0
      %465 = vmatpush.bf16.msra.mxu0 0
      %466 = vmatpush.bf16.msra.mxu0 0
      %467 = vmatpush.bf16.msra.mxu0 0
      %468 = vmatpush.bf16.msra.mxu0 0
      %469 = vmatpush.bf16.msra.mxu0 0
      %470 = vmatpush.bf16.msra.mxu0 0
      %471 = vmatpush.bf16.msra.mxu0 0
      %472 = vmatpush.bf16.msra.mxu0 %v432
      %473 = vmatmul.bf16.gmra.mxu0 %v436
      %v474 = vpop.f32.mrf.mxu0
      %v475 = vadd.f32 %v426, %v474
      %v476 = vpop.f32.mrf.mxu0
      %v477 = vadd.f32 %v426, %v476
      %478 = vmatmul.bf16.gmra.mxu0 %v439
      %v479 = vpop.f32.mrf.mxu0
      %v480 = vadd.f32 %v426, %v479
      %v481 = vpop.f32.mrf.mxu0
      %v482 = vadd.f32 %v426, %v481
      %483 = vmatmul.bf16.gmra.mxu0 %v442
      %v484 = vpop.f32.mrf.mxu0
      %v485 = vadd.f32 %v426, %v484
      %v486 = vpop.f32.mrf.mxu0
      %v487 = vadd.f32 %v426, %v486
      %488 = vmatmul.bf16.gmra.mxu0 %v445
      %v489 = vpop.f32.mrf.mxu0
      %v490 = vadd.f32 %v426, %v489
      %v491 = vpop.f32.mrf.mxu0
      %v492 = vadd.f32 %v426, %v491
      %493 = vmatmul.bf16.gmra.mxu0 %v448
      %v494 = vpop.f32.mrf.mxu0
      %v495 = vadd.f32 %v426, %v494
      %v496 = vpop.f32.mrf.mxu0
      %v497 = vadd.f32 %v426, %v496
      %498 = vmatmul.bf16.gmra.mxu0 %v451
      %v499 = vpop.f32.mrf.mxu0
      %v500 = vadd.f32 %v426, %v499
      %v501 = vpop.f32.mrf.mxu0
      %v502 = vadd.f32 %v426, %v501
      %503 = vmatmul.bf16.gmra.mxu0 %v454
      %v504 = vpop.f32.mrf.mxu0
      %v505 = vadd.f32 %v426, %v504
      %v506 = vpop.f32.mrf.mxu0
      %v507 = vadd.f32 %v426, %v506
      %508 = vmatmul.bf16.gmra.mxu0 %v457
      %v509 = vpop.f32.mrf.mxu0
      %v510 = vadd.f32 %v426, %v509
      %v511 = vpop.f32.mrf.mxu0
      %v512 = vadd.f32 %v426, %v511
      %513 = vmatmul.bf16.gmra.mxu0 %v460
      %v514 = vpop.f32.mrf.mxu0
      %v515 = vadd.f32 %v426, %v514
      %v516 = vpop.f32.mrf.mxu0
      %v517 = vadd.f32 %v426, %v516
      %518 = vmatmul.bf16.gmra.mxu0 %v463
      %v519 = vpop.f32.mrf.mxu0
      %v520 = vadd.f32 %v426, %v519
      %v521 = vpop.f32.mrf.mxu0
      %522 = vdwg.mxu0
      %vm523 = vcmp.ge.f32.partialorder %v475, 0.0
      %vm524 = vcmp.ge.f32.partialorder %v477, 0.0
      %vm525 = vcmp.ge.f32.partialorder %v480, 0.0
      %vm526 = vcmp.ge.f32.partialorder %v482, 0.0
      %vm527 = vcmp.ge.f32.partialorder %v485, 0.0
      %vm528 = vcmp.ge.f32.partialorder %v487, 0.0
      %vm529 = vcmp.ge.f32.partialorder %v490, 0.0
      %vm530 = vcmp.ge.f32.partialorder %v492, 0.0
      %vm531 = vcmp.ge.f32.partialorder %v495, 0.0
      %vm532 = vcmp.ge.f32.partialorder %v497, 0.0
      %vm533 = vcmp.ge.f32.partialorder %v500, 0.0
      %vm534 = vcmp.ge.f32.partialorder %v502, 0.0
      %vm535 = vcmp.ge.f32.partialorder %v505, 0.0
      %vm536 = vcmp.ge.f32.partialorder %v507, 0.0
      %vm537 = vcmp.ge.f32.partialorder %v510, 0.0
      %vm538 = vcmp.ge.f32.partialorder %v512, 0.0
      %vm539 = vcmp.ge.f32.partialorder %v515, 0.0
      %vm540 = vcmp.ge.f32.partialorder %v517, 0.0
      %vm541 = vcmp.ge.f32.partialorder %v520, 0.0
      %v542 = vmul.f32 %v475, 0.01
      %v543 = vmul.f32 %v477, 0.01
      %v544 = vmul.f32 %v480, 0.01
      %v545 = vmul.f32 %v482, 0.01
      %v546 = vmul.f32 %v485, 0.01
      %v547 = vmul.f32 %v487, 0.01
      %v548 = vmul.f32 %v490, 0.01
      %v549 = vmul.f32 %v492, 0.01
      %v550 = vmul.f32 %v495, 0.01
      %v551 = vmul.f32 %v497, 0.01
      %v552 = vmul.f32 %v500, 0.01
      %v553 = vmul.f32 %v502, 0.01
      %v554 = vmul.f32 %v505, 0.01
      %v555 = vmul.f32 %v507, 0.01
      %v556 = vmul.f32 %v510, 0.01
      %v557 = vmul.f32 %v512, 0.01
      %v558 = vmul.f32 %v515, 0.01
      %v559 = vmul.f32 %v517, 0.01
      %v560 = vmul.f32 %v520, 0.01
      %v561 = vsel %vm523, %v475, %v542
      %v562 = vsel %vm524, %v477, %v543
      %v563 = vsel %vm525, %v480, %v544
      %v564 = vsel %vm526, %v482, %v545
      %v565 = vsel %vm527, %v485, %v546
      %v566 = vsel %vm528, %v487, %v547
      %v567 = vsel %vm529, %v490, %v548
      %v568 = vsel %vm530, %v492, %v549
      %v569 = vsel %vm531, %v495, %v550
      %v570 = vsel %vm532, %v497, %v551
      %v571 = vsel %vm533, %v500, %v552
      %v572 = vsel %vm534, %v502, %v553
      %v573 = vsel %vm535, %v505, %v554
      %v574 = vsel %vm536, %v507, %v555
      %v575 = vsel %vm537, %v510, %v556
      %v576 = vsel %vm538, %v512, %v557
      %v577 = vsel %vm539, %v515, %v558
      %v578 = vsel %vm540, %v517, %v559
      %v579 = vsel %vm541, %v520, %v560
      %v580 = vpack.c.bf16 %v562, %v561
      %v581 = vpack.c.bf16 %v564, %v563
      %v582 = vpack.c.bf16 %v566, %v565
      %v583 = vpack.c.bf16 %v568, %v567
      %v584 = vpack.c.bf16 %v570, %v569
      %v585 = vpack.c.bf16 %v572, %v571
      %v586 = vpack.c.bf16 %v574, %v573
      %v587 = vpack.c.bf16 %v576, %v575
      %v588 = vpack.c.bf16 %v578, %v577
      %v589 = vpack.c.bf16 %v579, %v579
      %v590 = vld [vmem:[%s3] sm:$0xf]
      %v591 = vld [vmem:[%s3 + $0x4] sm:$0xf]
      %v592 = vld [vmem:[%s3 + $0x8] sm:$0xf]
      %v593 = vld [vmem:[%s3 + $0xc] sm:$0xf]
      %v594 = vld [vmem:[%s3 + $0x10] sm:$0xf]
      %v595 = vld [vmem:[%s3 + $0x14] sm:$0xf]
      %v596 = vld [vmem:[%s3 + $0x18] sm:$0xf]
      %v597 = vld [vmem:[%s3 + $0x1c] sm:$0xf]
      %v598 = vld [vmem:[%s3 + $0x20] sm:$0xf]
      %v599 = vld [vmem:[%s3 + $0x24] sm:$0xf]
      %v600 = vld [vmem:[%s3 + $0x28] sm:$0xf]
      %v601 = vld [vmem:[%s3 + $0x2c] sm:$0xf]
      %v602 = vld [vmem:[%s3 + $0x30] sm:$0xf]
      %v603 = vld [vmem:[%s3 + $0x34] sm:$0xf]
      %v604 = vld [vmem:[%s3 + $0x38] sm:$0xf]
      %v605 = vld [vmem:[%s3 + $0x3c] sm:$0xf]
      %v606 = vld [vmem:[%s4] sm:$0x1]
      %v608 = vperm.slane %v606, 0
      %v626 = vunpack.c.l.b16 %v590
      %v627 = vunpack.c.l.b16 %v591
      %v628 = vunpack.c.l.b16 %v592
      %v629 = vunpack.c.l.b16 %v593
      %v630 = vunpack.c.l.b16 %v594
      %v631 = vunpack.c.l.b16 %v595
      %v632 = vunpack.c.l.b16 %v596
      %v633 = vunpack.c.l.b16 %v597
      %v634 = vunpack.c.l.b16 %v598
      %v635 = vunpack.c.l.b16 %v599
      %v636 = vunpack.c.l.b16 %v600
      %v637 = vunpack.c.l.b16 %v601
      %v638 = vunpack.c.l.b16 %v602
      %v639 = vunpack.c.l.b16 %v603
      %v640 = vunpack.c.l.b16 %v604
      %v641 = vunpack.c.l.b16 %v605
      %v642 = vpack.c.b16 %v627, %v626
      %v643 = vpack.c.b16 %v629, %v628
      %v644 = vpack.c.b16 %v631, %v630
      %v645 = vpack.c.b16 %v633, %v632
      %v646 = vpack.c.b16 %v635, %v634
      %v647 = vpack.c.b16 %v637, %v636
      %v648 = vpack.c.b16 %v639, %v638
      %v649 = vpack.c.b16 %v641, %v640
      %658 = vmatpush.bf16.msra.mxu0 %v649
      %659 = vmatpush.bf16.msra.mxu0 %v648
      %660 = vmatpush.bf16.msra.mxu0 %v647
      %661 = vmatpush.bf16.msra.mxu0 %v646
      %662 = vmatpush.bf16.msra.mxu0 %v645
      %663 = vmatpush.bf16.msra.mxu0 %v644
      %664 = vmatpush.bf16.msra.mxu0 %v643
      %665 = vmatpush.bf16.msra.mxu0 %v642
      %666 = vmatmul.bf16.gmra.mxu0 %v580
      %v667 = vpop.f32.mrf.mxu0
      %v668 = vadd.f32 %v608, %v667
      %v669 = vpop.f32.mrf.mxu0
      %v670 = vadd.f32 %v608, %v669
      %671 = vmatmul.bf16.gmra.mxu0 %v581
      %v672 = vpop.f32.mrf.mxu0
      %v673 = vadd.f32 %v608, %v672
      %v674 = vpop.f32.mrf.mxu0
      %v675 = vadd.f32 %v608, %v674
      %676 = vmatmul.bf16.gmra.mxu0 %v582
      %v677 = vpop.f32.mrf.mxu0
      %v678 = vadd.f32 %v608, %v677
      %v679 = vpop.f32.mrf.mxu0
      %v680 = vadd.f32 %v608, %v679
      %681 = vmatmul.bf16.gmra.mxu0 %v583
      %v682 = vpop.f32.mrf.mxu0
      %v683 = vadd.f32 %v608, %v682
      %v684 = vpop.f32.mrf.mxu0
      %v685 = vadd.f32 %v608, %v684
      %686 = vmatmul.bf16.gmra.mxu0 %v584
      %v687 = vpop.f32.mrf.mxu0
      %v688 = vadd.f32 %v608, %v687
      %v689 = vpop.f32.mrf.mxu0
      %v690 = vadd.f32 %v608, %v689
      %691 = vmatmul.bf16.gmra.mxu0 %v585
      %v692 = vpop.f32.mrf.mxu0
      %v693 = vadd.f32 %v608, %v692
      %v694 = vpop.f32.mrf.mxu0
      %v695 = vadd.f32 %v608, %v694
      %696 = vmatmul.bf16.gmra.mxu0 %v586
      %v697 = vpop.f32.mrf.mxu0
      %v698 = vadd.f32 %v608, %v697
      %v699 = vpop.f32.mrf.mxu0
      %v700 = vadd.f32 %v608, %v699
      %701 = vmatmul.bf16.gmra.mxu0 %v587
      %v702 = vpop.f32.mrf.mxu0
      %v703 = vadd.f32 %v608, %v702
      %v704 = vpop.f32.mrf.mxu0
      %v705 = vadd.f32 %v608, %v704
      %706 = vmatmul.bf16.gmra.mxu0 %v588
      %v707 = vpop.f32.mrf.mxu0
      %v708 = vadd.f32 %v608, %v707
      %v709 = vpop.f32.mrf.mxu0
      %v710 = vadd.f32 %v608, %v709
      %711 = vmatmul.bf16.gmra.mxu0 %v589
      %v712 = vpop.f32.mrf.mxu0
      %v713 = vadd.f32 %v608, %v712
      %v714 = vpop.f32.mrf.mxu0
      %715 = vdwg.mxu0
      %vm716 = vcmp.ge.f32.partialorder %v668, 0.0
      %vm717 = vcmp.ge.f32.partialorder %v670, 0.0
      %vm718 = vcmp.ge.f32.partialorder %v673, 0.0
      %vm719 = vcmp.ge.f32.partialorder %v675, 0.0
      %vm720 = vcmp.ge.f32.partialorder %v678, 0.0
      %vm721 = vcmp.ge.f32.partialorder %v680, 0.0
      %vm722 = vcmp.ge.f32.partialorder %v683, 0.0
      %vm723 = vcmp.ge.f32.partialorder %v685, 0.0
      %vm724 = vcmp.ge.f32.partialorder %v688, 0.0
      %vm725 = vcmp.ge.f32.partialorder %v690, 0.0
      %vm726 = vcmp.ge.f32.partialorder %v693, 0.0
      %vm727 = vcmp.ge.f32.partialorder %v695, 0.0
      %vm728 = vcmp.ge.f32.partialorder %v698, 0.0
      %vm729 = vcmp.ge.f32.partialorder %v700, 0.0
      %vm730 = vcmp.ge.f32.partialorder %v703, 0.0
      %vm731 = vcmp.ge.f32.partialorder %v705, 0.0
      %vm732 = vcmp.ge.f32.partialorder %v708, 0.0
      %vm733 = vcmp.ge.f32.partialorder %v710, 0.0
      %vm734 = vcmp.ge.f32.partialorder %v713, 0.0
      %v735 = vmul.f32 %v668, 0.01
      %v736 = vmul.f32 %v670, 0.01
      %v737 = vmul.f32 %v673, 0.01
      %v738 = vmul.f32 %v675, 0.01
      %v739 = vmul.f32 %v678, 0.01
      %v740 = vmul.f32 %v680, 0.01
      %v741 = vmul.f32 %v683, 0.01
      %v742 = vmul.f32 %v685, 0.01
      %v743 = vmul.f32 %v688, 0.01
      %v744 = vmul.f32 %v690, 0.01
      %v745 = vmul.f32 %v693, 0.01
      %v746 = vmul.f32 %v695, 0.01
      %v747 = vmul.f32 %v698, 0.01
      %v748 = vmul.f32 %v700, 0.01
      %v749 = vmul.f32 %v703, 0.01
      %v750 = vmul.f32 %v705, 0.01
      %v751 = vmul.f32 %v708, 0.01
      %v752 = vmul.f32 %v710, 0.01
      %v753 = vmul.f32 %v713, 0.01
      %v754 = vsel %vm716, %v668, %v735
      %v755 = vsel %vm717, %v670, %v736
      %v756 = vsel %vm718, %v673, %v737
      %v757 = vsel %vm719, %v675, %v738
      %v758 = vsel %vm720, %v678, %v739
      %v759 = vsel %vm721, %v680, %v740
      %v760 = vsel %vm722, %v683, %v741
      %v761 = vsel %vm723, %v685, %v742
      %v762 = vsel %vm724, %v688, %v743
      %v763 = vsel %vm725, %v690, %v744
      %v764 = vsel %vm726, %v693, %v745
      %v765 = vsel %vm727, %v695, %v746
      %v766 = vsel %vm728, %v698, %v747
      %v767 = vsel %vm729, %v700, %v748
      %v768 = vsel %vm730, %v703, %v749
      %v769 = vsel %vm731, %v705, %v750
      %v770 = vsel %vm732, %v708, %v751
      %v771 = vsel %vm733, %v710, %v752
      %v772 = vsel %vm734, %v713, %v753
      %v773 = vpack.c.bf16 %v755, %v754
      %v774 = vpack.c.bf16 %v757, %v756
      %v775 = vpack.c.bf16 %v759, %v758
      %v776 = vpack.c.bf16 %v761, %v760
      %v777 = vpack.c.bf16 %v763, %v762
      %v778 = vpack.c.bf16 %v765, %v764
      %v779 = vpack.c.bf16 %v767, %v766
      %v780 = vpack.c.bf16 %v769, %v768
      %v781 = vpack.c.bf16 %v771, %v770
      %v782 = vpack.c.bf16 %v772, %v772
      %v783 = vld [vmem:[%s5] sm:$0xf]
      %v784 = vld [vmem:[%s5 + $0x4] sm:$0xf]
      %v785 = vld [vmem:[%s5 + $0x8] sm:$0xf]
      %v786 = vld [vmem:[%s5 + $0xc] sm:$0xf]
      %v787 = vld [vmem:[%s5 + $0x10] sm:$0xf]
      %v788 = vld [vmem:[%s5 + $0x14] sm:$0xf]
      %v789 = vld [vmem:[%s5 + $0x18] sm:$0xf]
      %v790 = vld [vmem:[%s5 + $0x1c] sm:$0xf]
      %v791 = vld [vmem:[%s5 + $0x20] sm:$0xf]
      %v792 = vld [vmem:[%s5 + $0x24] sm:$0xf]
      %v793 = vld [vmem:[%s5 + $0x28] sm:$0xf]
      %v794 = vld [vmem:[%s5 + $0x2c] sm:$0xf]
      %v795 = vld [vmem:[%s5 + $0x30] sm:$0xf]
      %v796 = vld [vmem:[%s5 + $0x34] sm:$0xf]
      %v797 = vld [vmem:[%s5 + $0x38] sm:$0xf]
      %v798 = vld [vmem:[%s5 + $0x3c] sm:$0xf]
      %v799 = vld [vmem:[%s6] sm:$0x1]
      %v801 = vperm.slane %v799, 0
      %v819 = vunpack.c.l.b16 %v783
      %v820 = vunpack.c.l.b16 %v784
      %v821 = vunpack.c.l.b16 %v785
      %v822 = vunpack.c.l.b16 %v786
      %v823 = vunpack.c.l.b16 %v787
      %v824 = vunpack.c.l.b16 %v788
      %v825 = vunpack.c.l.b16 %v789
      %v826 = vunpack.c.l.b16 %v790
      %v827 = vunpack.c.l.b16 %v791
      %v828 = vunpack.c.l.b16 %v792
      %v829 = vunpack.c.l.b16 %v793
      %v830 = vunpack.c.l.b16 %v794
      %v831 = vunpack.c.l.b16 %v795
      %v832 = vunpack.c.l.b16 %v796
      %v833 = vunpack.c.l.b16 %v797
      %v834 = vunpack.c.l.b16 %v798
      %v835 = vpack.c.b16 %v820, %v819
      %v836 = vpack.c.b16 %v822, %v821
      %v837 = vpack.c.b16 %v824, %v823
      %v838 = vpack.c.b16 %v826, %v825
      %v839 = vpack.c.b16 %v828, %v827
      %v840 = vpack.c.b16 %v830, %v829
      %v841 = vpack.c.b16 %v832, %v831
      %v842 = vpack.c.b16 %v834, %v833
      %851 = vmatpush.bf16.msra.mxu0 %v842
      %852 = vmatpush.bf16.msra.mxu0 %v841
      %853 = vmatpush.bf16.msra.mxu0 %v840
      %854 = vmatpush.bf16.msra.mxu0 %v839
      %855 = vmatpush.bf16.msra.mxu0 %v838
      %856 = vmatpush.bf16.msra.mxu0 %v837
      %857 = vmatpush.bf16.msra.mxu0 %v836
      %858 = vmatpush.bf16.msra.mxu0 %v835
      %859 = vmatmul.bf16.gmra.mxu0 %v773
      %v860 = vpop.f32.mrf.mxu0
      %v861 = vadd.f32 %v801, %v860
      %v862 = vpop.f32.mrf.mxu0
      %v863 = vadd.f32 %v801, %v862
      %864 = vmatmul.bf16.gmra.mxu0 %v774
      %v865 = vpop.f32.mrf.mxu0
      %v866 = vadd.f32 %v801, %v865
      %v867 = vpop.f32.mrf.mxu0
      %v868 = vadd.f32 %v801, %v867
      %869 = vmatmul.bf16.gmra.mxu0 %v775
      %v870 = vpop.f32.mrf.mxu0
      %v871 = vadd.f32 %v801, %v870
      %v872 = vpop.f32.mrf.mxu0
      %v873 = vadd.f32 %v801, %v872
      %874 = vmatmul.bf16.gmra.mxu0 %v776
      %v875 = vpop.f32.mrf.mxu0
      %v876 = vadd.f32 %v801, %v875
      %v877 = vpop.f32.mrf.mxu0
      %v878 = vadd.f32 %v801, %v877
      %879 = vmatmul.bf16.gmra.mxu0 %v777
      %v880 = vpop.f32.mrf.mxu0
      %v881 = vadd.f32 %v801, %v880
      %v882 = vpop.f32.mrf.mxu0
      %v883 = vadd.f32 %v801, %v882
      %884 = vmatmul.bf16.gmra.mxu0 %v778
      %v885 = vpop.f32.mrf.mxu0
      %v886 = vadd.f32 %v801, %v885
      %v887 = vpop.f32.mrf.mxu0
      %v888 = vadd.f32 %v801, %v887
      %889 = vmatmul.bf16.gmra.mxu0 %v779
      %v890 = vpop.f32.mrf.mxu0
      %v891 = vadd.f32 %v801, %v890
      %v892 = vpop.f32.mrf.mxu0
      %v893 = vadd.f32 %v801, %v892
      %894 = vmatmul.bf16.gmra.mxu0 %v780
      %v895 = vpop.f32.mrf.mxu0
      %v896 = vadd.f32 %v801, %v895
      %v897 = vpop.f32.mrf.mxu0
      %v898 = vadd.f32 %v801, %v897
      %899 = vmatmul.bf16.gmra.mxu0 %v781
      %v900 = vpop.f32.mrf.mxu0
      %v901 = vadd.f32 %v801, %v900
      %v902 = vpop.f32.mrf.mxu0
      %v903 = vadd.f32 %v801, %v902
      %904 = vmatmul.bf16.gmra.mxu0 %v782
      %v905 = vpop.f32.mrf.mxu0
      %v906 = vadd.f32 %v801, %v905
      %v907 = vpop.f32.mrf.mxu0
      %908 = vdwg.mxu0
      %vm909 = vcmp.ge.f32.partialorder %v861, 0.0
      %vm910 = vcmp.ge.f32.partialorder %v863, 0.0
      %vm911 = vcmp.ge.f32.partialorder %v866, 0.0
      %vm912 = vcmp.ge.f32.partialorder %v868, 0.0
      %vm913 = vcmp.ge.f32.partialorder %v871, 0.0
      %vm914 = vcmp.ge.f32.partialorder %v873, 0.0
      %vm915 = vcmp.ge.f32.partialorder %v876, 0.0
      %vm916 = vcmp.ge.f32.partialorder %v878, 0.0
      %vm917 = vcmp.ge.f32.partialorder %v881, 0.0
      %vm918 = vcmp.ge.f32.partialorder %v883, 0.0
      %vm919 = vcmp.ge.f32.partialorder %v886, 0.0
      %vm920 = vcmp.ge.f32.partialorder %v888, 0.0
      %vm921 = vcmp.ge.f32.partialorder %v891, 0.0
      %vm922 = vcmp.ge.f32.partialorder %v893, 0.0
      %vm923 = vcmp.ge.f32.partialorder %v896, 0.0
      %vm924 = vcmp.ge.f32.partialorder %v898, 0.0
      %vm925 = vcmp.ge.f32.partialorder %v901, 0.0
      %vm926 = vcmp.ge.f32.partialorder %v903, 0.0
      %vm927 = vcmp.ge.f32.partialorder %v906, 0.0
      %v928 = vmul.f32 %v861, 0.01
      %v929 = vmul.f32 %v863, 0.01
      %v930 = vmul.f32 %v866, 0.01
      %v931 = vmul.f32 %v868, 0.01
      %v932 = vmul.f32 %v871, 0.01
      %v933 = vmul.f32 %v873, 0.01
      %v934 = vmul.f32 %v876, 0.01
      %v935 = vmul.f32 %v878, 0.01
      %v936 = vmul.f32 %v881, 0.01
      %v937 = vmul.f32 %v883, 0.01
      %v938 = vmul.f32 %v886, 0.01
      %v939 = vmul.f32 %v888, 0.01
      %v940 = vmul.f32 %v891, 0.01
      %v941 = vmul.f32 %v893, 0.01
      %v942 = vmul.f32 %v896, 0.01
      %v943 = vmul.f32 %v898, 0.01
      %v944 = vmul.f32 %v901, 0.01
      %v945 = vmul.f32 %v903, 0.01
      %v946 = vmul.f32 %v906, 0.01
      %v947 = vsel %vm909, %v861, %v928
      %v948 = vsel %vm910, %v863, %v929
      %v949 = vsel %vm911, %v866, %v930
      %v950 = vsel %vm912, %v868, %v931
      %v951 = vsel %vm913, %v871, %v932
      %v952 = vsel %vm914, %v873, %v933
      %v953 = vsel %vm915, %v876, %v934
      %v954 = vsel %vm916, %v878, %v935
      %v955 = vsel %vm917, %v881, %v936
      %v956 = vsel %vm918, %v883, %v937
      %v957 = vsel %vm919, %v886, %v938
      %v958 = vsel %vm920, %v888, %v939
      %v959 = vsel %vm921, %v891, %v940
      %v960 = vsel %vm922, %v893, %v941
      %v961 = vsel %vm923, %v896, %v942
      %v962 = vsel %vm924, %v898, %v943
      %v963 = vsel %vm925, %v901, %v944
      %v964 = vsel %vm926, %v903, %v945
      %v965 = vsel %vm927, %v906, %v946
      %v966 = vpack.c.bf16 %v948, %v947
      %v967 = vpack.c.bf16 %v950, %v949
      %v968 = vpack.c.bf16 %v952, %v951
      %v969 = vpack.c.bf16 %v954, %v953
      %v970 = vpack.c.bf16 %v956, %v955
      %v971 = vpack.c.bf16 %v958, %v957
      %v972 = vpack.c.bf16 %v960, %v959
      %v973 = vpack.c.bf16 %v962, %v961
      %v974 = vpack.c.bf16 %v964, %v963
      %v975 = vpack.c.bf16 %v965, %v965
      %v976 = vld [vmem:[%s7] sm:$0xf]
      %v977 = vld [vmem:[%s7 + $0x4] sm:$0xf]
      %v978 = vld [vmem:[%s7 + $0x8] sm:$0xf]
      %v979 = vld [vmem:[%s7 + $0xc] sm:$0xf]
      %v980 = vld [vmem:[%s7 + $0x10] sm:$0xf]
      %v981 = vld [vmem:[%s7 + $0x14] sm:$0xf]
      %v982 = vld [vmem:[%s7 + $0x18] sm:$0xf]
      %v983 = vld [vmem:[%s7 + $0x1c] sm:$0xf]
      %v984 = vld [vmem:[%s7 + $0x20] sm:$0xf]
      %v985 = vld [vmem:[%s7 + $0x24] sm:$0xf]
      %v986 = vld [vmem:[%s7 + $0x28] sm:$0xf]
      %v987 = vld [vmem:[%s7 + $0x2c] sm:$0xf]
      %v988 = vld [vmem:[%s7 + $0x30] sm:$0xf]
      %v989 = vld [vmem:[%s7 + $0x34] sm:$0xf]
      %v990 = vld [vmem:[%s7 + $0x38] sm:$0xf]
      %v991 = vld [vmem:[%s7 + $0x3c] sm:$0xf]
      %v992 = vld [vmem:[%s8] sm:$0x1]
      %v994 = vperm.slane %v992, 0
      %v1012 = vunpack.c.l.b16 %v976
      %v1013 = vunpack.c.l.b16 %v977
      %v1014 = vunpack.c.l.b16 %v978
      %v1015 = vunpack.c.l.b16 %v979
      %v1016 = vunpack.c.l.b16 %v980
      %v1017 = vunpack.c.l.b16 %v981
      %v1018 = vunpack.c.l.b16 %v982
      %v1019 = vunpack.c.l.b16 %v983
      %v1020 = vunpack.c.l.b16 %v984
      %v1021 = vunpack.c.l.b16 %v985
      %v1022 = vunpack.c.l.b16 %v986
      %v1023 = vunpack.c.l.b16 %v987
      %v1024 = vunpack.c.l.b16 %v988
      %v1025 = vunpack.c.l.b16 %v989
      %v1026 = vunpack.c.l.b16 %v990
      %v1027 = vunpack.c.l.b16 %v991
      %v1028 = vpack.c.b16 %v1013, %v1012
      %v1029 = vpack.c.b16 %v1015, %v1014
      %v1030 = vpack.c.b16 %v1017, %v1016
      %v1031 = vpack.c.b16 %v1019, %v1018
      %v1032 = vpack.c.b16 %v1021, %v1020
      %v1033 = vpack.c.b16 %v1023, %v1022
      %v1034 = vpack.c.b16 %v1025, %v1024
      %v1035 = vpack.c.b16 %v1027, %v1026
      %1044 = vmatpush.bf16.msra.mxu0 %v1035
      %1045 = vmatpush.bf16.msra.mxu0 %v1034
      %1046 = vmatpush.bf16.msra.mxu0 %v1033
      %1047 = vmatpush.bf16.msra.mxu0 %v1032
      %1048 = vmatpush.bf16.msra.mxu0 %v1031
      %1049 = vmatpush.bf16.msra.mxu0 %v1030
      %1050 = vmatpush.bf16.msra.mxu0 %v1029
      %1051 = vmatpush.bf16.msra.mxu0 %v1028
      %1052 = vmatmul.bf16.gmra.mxu0 %v966
      %v1053 = vpop.f32.mrf.mxu0
      %v1054 = vadd.f32 %v994, %v1053
      %v1055 = vpop.f32.mrf.mxu0
      %v1056 = vadd.f32 %v994, %v1055
      %1057 = vmatmul.bf16.gmra.mxu0 %v967
      %v1058 = vpop.f32.mrf.mxu0
      %v1059 = vadd.f32 %v994, %v1058
      %v1060 = vpop.f32.mrf.mxu0
      %v1061 = vadd.f32 %v994, %v1060
      %1062 = vmatmul.bf16.gmra.mxu0 %v968
      %v1063 = vpop.f32.mrf.mxu0
      %v1064 = vadd.f32 %v994, %v1063
      %v1065 = vpop.f32.mrf.mxu0
      %v1066 = vadd.f32 %v994, %v1065
      %1067 = vmatmul.bf16.gmra.mxu0 %v969
      %v1068 = vpop.f32.mrf.mxu0
      %v1069 = vadd.f32 %v994, %v1068
      %v1070 = vpop.f32.mrf.mxu0
      %v1071 = vadd.f32 %v994, %v1070
      %1072 = vmatmul.bf16.gmra.mxu0 %v970
      %v1073 = vpop.f32.mrf.mxu0
      %v1074 = vadd.f32 %v994, %v1073
      %v1075 = vpop.f32.mrf.mxu0
      %v1076 = vadd.f32 %v994, %v1075
      %1077 = vmatmul.bf16.gmra.mxu0 %v971
      %v1078 = vpop.f32.mrf.mxu0
      %v1079 = vadd.f32 %v994, %v1078
      %v1080 = vpop.f32.mrf.mxu0
      %v1081 = vadd.f32 %v994, %v1080
      %1082 = vmatmul.bf16.gmra.mxu0 %v972
      %v1083 = vpop.f32.mrf.mxu0
      %v1084 = vadd.f32 %v994, %v1083
      %v1085 = vpop.f32.mrf.mxu0
      %v1086 = vadd.f32 %v994, %v1085
      %1087 = vmatmul.bf16.gmra.mxu0 %v973
      %v1088 = vpop.f32.mrf.mxu0
      %v1089 = vadd.f32 %v994, %v1088
      %v1090 = vpop.f32.mrf.mxu0
      %v1091 = vadd.f32 %v994, %v1090
      %1092 = vmatmul.bf16.gmra.mxu0 %v974
      %v1093 = vpop.f32.mrf.mxu0
      %v1094 = vadd.f32 %v994, %v1093
      %v1095 = vpop.f32.mrf.mxu0
      %v1096 = vadd.f32 %v994, %v1095
      %1097 = vmatmul.bf16.gmra.mxu0 %v975
      %v1098 = vpop.f32.mrf.mxu0
      %v1099 = vadd.f32 %v994, %v1098
      %v1100 = vpop.f32.mrf.mxu0
      %1101 = vdwg.mxu0
      %vm1102 = vcmp.ge.f32.partialorder %v1054, 0.0
      %vm1103 = vcmp.ge.f32.partialorder %v1056, 0.0
      %vm1104 = vcmp.ge.f32.partialorder %v1059, 0.0
      %vm1105 = vcmp.ge.f32.partialorder %v1061, 0.0
      %vm1106 = vcmp.ge.f32.partialorder %v1064, 0.0
      %vm1107 = vcmp.ge.f32.partialorder %v1066, 0.0
      %vm1108 = vcmp.ge.f32.partialorder %v1069, 0.0
      %vm1109 = vcmp.ge.f32.partialorder %v1071, 0.0
      %vm1110 = vcmp.ge.f32.partialorder %v1074, 0.0
      %vm1111 = vcmp.ge.f32.partialorder %v1076, 0.0
      %vm1112 = vcmp.ge.f32.partialorder %v1079, 0.0
      %vm1113 = vcmp.ge.f32.partialorder %v1081, 0.0
      %vm1114 = vcmp.ge.f32.partialorder %v1084, 0.0
      %vm1115 = vcmp.ge.f32.partialorder %v1086, 0.0
      %vm1116 = vcmp.ge.f32.partialorder %v1089, 0.0
      %vm1117 = vcmp.ge.f32.partialorder %v1091, 0.0
      %vm1118 = vcmp.ge.f32.partialorder %v1094, 0.0
      %vm1119 = vcmp.ge.f32.partialorder %v1096, 0.0
      %vm1120 = vcmp.ge.f32.partialorder %v1099, 0.0
      %v1121 = vmul.f32 %v1054, 0.01
      %v1122 = vmul.f32 %v1056, 0.01
      %v1123 = vmul.f32 %v1059, 0.01
      %v1124 = vmul.f32 %v1061, 0.01
      %v1125 = vmul.f32 %v1064, 0.01
      %v1126 = vmul.f32 %v1066, 0.01
      %v1127 = vmul.f32 %v1069, 0.01
      %v1128 = vmul.f32 %v1071, 0.01
      %v1129 = vmul.f32 %v1074, 0.01
      %v1130 = vmul.f32 %v1076, 0.01
      %v1131 = vmul.f32 %v1079, 0.01
      %v1132 = vmul.f32 %v1081, 0.01
      %v1133 = vmul.f32 %v1084, 0.01
      %v1134 = vmul.f32 %v1086, 0.01
      %v1135 = vmul.f32 %v1089, 0.01
      %v1136 = vmul.f32 %v1091, 0.01
      %v1137 = vmul.f32 %v1094, 0.01
      %v1138 = vmul.f32 %v1096, 0.01
      %v1139 = vmul.f32 %v1099, 0.01
      %v1140 = vsel %vm1102, %v1054, %v1121
      %v1141 = vsel %vm1103, %v1056, %v1122
      %v1142 = vsel %vm1104, %v1059, %v1123
      %v1143 = vsel %vm1105, %v1061, %v1124
      %v1144 = vsel %vm1106, %v1064, %v1125
      %v1145 = vsel %vm1107, %v1066, %v1126
      %v1146 = vsel %vm1108, %v1069, %v1127
      %v1147 = vsel %vm1109, %v1071, %v1128
      %v1148 = vsel %vm1110, %v1074, %v1129
      %v1149 = vsel %vm1111, %v1076, %v1130
      %v1150 = vsel %vm1112, %v1079, %v1131
      %v1151 = vsel %vm1113, %v1081, %v1132
      %v1152 = vsel %vm1114, %v1084, %v1133
      %v1153 = vsel %vm1115, %v1086, %v1134
      %v1154 = vsel %vm1116, %v1089, %v1135
      %v1155 = vsel %vm1117, %v1091, %v1136
      %v1156 = vsel %vm1118, %v1094, %v1137
      %v1157 = vsel %vm1119, %v1096, %v1138
      %v1158 = vsel %vm1120, %v1099, %v1139
      %v1159 = vpack.c.bf16 %v1141, %v1140
      %v1160 = vpack.c.bf16 %v1143, %v1142
      %v1161 = vpack.c.bf16 %v1145, %v1144
      %v1162 = vpack.c.bf16 %v1147, %v1146
      %v1163 = vpack.c.bf16 %v1149, %v1148
      %v1164 = vpack.c.bf16 %v1151, %v1150
      %v1165 = vpack.c.bf16 %v1153, %v1152
      %v1166 = vpack.c.bf16 %v1155, %v1154
      %v1167 = vpack.c.bf16 %v1157, %v1156
      %v1168 = vpack.c.bf16 %v1158, %v1158
      %v1169 = vld [vmem:[%s9] sm:$0xf]
      %v1170 = vld [vmem:[%s9 + $0x4] sm:$0xf]
      %v1171 = vld [vmem:[%s9 + $0x8] sm:$0xf]
      %v1172 = vld [vmem:[%s9 + $0xc] sm:$0xf]
      %v1173 = vld [vmem:[%s9 + $0x10] sm:$0xf]
      %v1174 = vld [vmem:[%s9 + $0x14] sm:$0xf]
      %v1175 = vld [vmem:[%s9 + $0x18] sm:$0xf]
      %v1176 = vld [vmem:[%s9 + $0x1c] sm:$0xf]
      %v1177 = vld [vmem:[%s9 + $0x20] sm:$0xf]
      %v1178 = vld [vmem:[%s9 + $0x24] sm:$0xf]
      %v1179 = vld [vmem:[%s9 + $0x28] sm:$0xf]
      %v1180 = vld [vmem:[%s9 + $0x2c] sm:$0xf]
      %v1181 = vld [vmem:[%s9 + $0x30] sm:$0xf]
      %v1182 = vld [vmem:[%s9 + $0x34] sm:$0xf]
      %v1183 = vld [vmem:[%s9 + $0x38] sm:$0xf]
      %v1184 = vld [vmem:[%s9 + $0x3c] sm:$0xf]
      %v1185 = vld [vmem:[#allocation2] sm:$0x1]
      %v1187 = vperm.slane %v1185, 0
      %v1205 = vunpack.c.l.b16 %v1169
      %v1206 = vunpack.c.l.b16 %v1170
      %v1207 = vunpack.c.l.b16 %v1171
      %v1208 = vunpack.c.l.b16 %v1172
      %v1209 = vunpack.c.l.b16 %v1173
      %v1210 = vunpack.c.l.b16 %v1174
      %v1211 = vunpack.c.l.b16 %v1175
      %v1212 = vunpack.c.l.b16 %v1176
      %v1213 = vunpack.c.l.b16 %v1177
      %v1214 = vunpack.c.l.b16 %v1178
      %v1215 = vunpack.c.l.b16 %v1179
      %v1216 = vunpack.c.l.b16 %v1180
      %v1217 = vunpack.c.l.b16 %v1181
      %v1218 = vunpack.c.l.b16 %v1182
      %v1219 = vunpack.c.l.b16 %v1183
      %v1220 = vunpack.c.l.b16 %v1184
      %v1221 = vpack.c.b16 %v1206, %v1205
      %v1222 = vpack.c.b16 %v1208, %v1207
      %v1223 = vpack.c.b16 %v1210, %v1209
      %v1224 = vpack.c.b16 %v1212, %v1211
      %v1225 = vpack.c.b16 %v1214, %v1213
      %v1226 = vpack.c.b16 %v1216, %v1215
      %v1227 = vpack.c.b16 %v1218, %v1217
      %v1228 = vpack.c.b16 %v1220, %v1219
      %1237 = vmatpush.bf16.msra.mxu0 %v1228
      %1238 = vmatpush.bf16.msra.mxu0 %v1227
      %1239 = vmatpush.bf16.msra.mxu0 %v1226
      %1240 = vmatpush.bf16.msra.mxu0 %v1225
      %1241 = vmatpush.bf16.msra.mxu0 %v1224
      %1242 = vmatpush.bf16.msra.mxu0 %v1223
      %1243 = vmatpush.bf16.msra.mxu0 %v1222
      %1244 = vmatpush.bf16.msra.mxu0 %v1221
      %1245 = vmatmul.bf16.gmra.mxu0 %v1159
      %v1246 = vpop.f32.mrf.mxu0
      %v1247 = vadd.f32 %v1187, %v1246
      %v1248 = vpop.f32.mrf.mxu0
      %v1249 = vadd.f32 %v1187, %v1248
      %1250 = vmatmul.bf16.gmra.mxu0 %v1160
      %v1251 = vpop.f32.mrf.mxu0
      %v1252 = vadd.f32 %v1187, %v1251
      %v1253 = vpop.f32.mrf.mxu0
      %v1254 = vadd.f32 %v1187, %v1253
      %1255 = vmatmul.bf16.gmra.mxu0 %v1161
      %v1256 = vpop.f32.mrf.mxu0
      %v1257 = vadd.f32 %v1187, %v1256
      %v1258 = vpop.f32.mrf.mxu0
      %v1259 = vadd.f32 %v1187, %v1258
      %1260 = vmatmul.bf16.gmra.mxu0 %v1162
      %v1261 = vpop.f32.mrf.mxu0
      %v1262 = vadd.f32 %v1187, %v1261
      %v1263 = vpop.f32.mrf.mxu0
      %v1264 = vadd.f32 %v1187, %v1263
      %1265 = vmatmul.bf16.gmra.mxu0 %v1163
      %v1266 = vpop.f32.mrf.mxu0
      %v1267 = vadd.f32 %v1187, %v1266
      %v1268 = vpop.f32.mrf.mxu0
      %v1269 = vadd.f32 %v1187, %v1268
      %1270 = vmatmul.bf16.gmra.mxu0 %v1164
      %v1271 = vpop.f32.mrf.mxu0
      %v1272 = vadd.f32 %v1187, %v1271
      %v1273 = vpop.f32.mrf.mxu0
      %v1274 = vadd.f32 %v1187, %v1273
      %1275 = vmatmul.bf16.gmra.mxu0 %v1165
      %v1276 = vpop.f32.mrf.mxu0
      %v1277 = vadd.f32 %v1187, %v1276
      %v1278 = vpop.f32.mrf.mxu0
      %v1279 = vadd.f32 %v1187, %v1278
      %1280 = vmatmul.bf16.gmra.mxu0 %v1166
      %v1281 = vpop.f32.mrf.mxu0
      %v1282 = vadd.f32 %v1187, %v1281
      %v1283 = vpop.f32.mrf.mxu0
      %v1284 = vadd.f32 %v1187, %v1283
      %1285 = vmatmul.bf16.gmra.mxu0 %v1167
      %v1286 = vpop.f32.mrf.mxu0
      %v1287 = vadd.f32 %v1187, %v1286
      %v1288 = vpop.f32.mrf.mxu0
      %v1289 = vadd.f32 %v1187, %v1288
      %1290 = vmatmul.bf16.gmra.mxu0 %v1168
      %v1291 = vpop.f32.mrf.mxu0
      %v1292 = vadd.f32 %v1187, %v1291
      %v1293 = vpop.f32.mrf.mxu0
      %1294 = vdwg.mxu0
      %vm1295 = vcmask 7168
      %1296 = vst.msk [vmem:[%s390] sm:$0xff] %vm1295, %v1247
      %1297 = vst.msk [vmem:[%s390 + $0x8] sm:$0xff] %vm1295, %v1249
      %1298 = vst.msk [vmem:[%s390 + $0x10] sm:$0xff] %vm1295, %v1252
      %1299 = vst.msk [vmem:[%s390 + $0x18] sm:$0xff] %vm1295, %v1254
      %1300 = vst.msk [vmem:[%s390 + $0x20] sm:$0xff] %vm1295, %v1257
      %1301 = vst.msk [vmem:[%s390 + $0x28] sm:$0xff] %vm1295, %v1259
      %1302 = vst.msk [vmem:[%s390 + $0x30] sm:$0xff] %vm1295, %v1262
      %1303 = vst.msk [vmem:[%s390 + $0x38] sm:$0xff] %vm1295, %v1264
      %1304 = vst.msk [vmem:[%s390 + $0x40] sm:$0xff] %vm1295, %v1267
      %1305 = vst.msk [vmem:[%s390 + $0x48] sm:$0xff] %vm1295, %v1269
      %1306 = vst.msk [vmem:[%s390 + $0x50] sm:$0xff] %vm1295, %v1272
      %1307 = vst.msk [vmem:[%s390 + $0x58] sm:$0xff] %vm1295, %v1274
      %1308 = vst.msk [vmem:[%s390 + $0x60] sm:$0xff] %vm1295, %v1277
      %1309 = vst.msk [vmem:[%s390 + $0x68] sm:$0xff] %vm1295, %v1279
      %1310 = vst.msk [vmem:[%s390 + $0x70] sm:$0xff] %vm1295, %v1282
      %1311 = vst.msk [vmem:[%s390 + $0x78] sm:$0xff] %vm1295, %v1284
      %1312 = vst.msk [vmem:[%s390 + $0x80] sm:$0xff] %vm1295, %v1287
      %1313 = vst.msk [vmem:[%s390 + $0x88] sm:$0xff] %vm1295, %v1289
      %1314 = vst.msk [vmem:[%s390 + $0x90] sm:$0xff] %vm1295, %v1292
      %s1315 = smul.u32 19, %s24
      %p1316 = scmp.lt.s32.totalorder %s1315, 37
      %s1317 = scalar_select %p1316, %s1315, 37
      %s1318 = smul.addr %s1317, 8
      %s1319 = scalar_lea.vmem %s11, %s1318
      // Predicated region
      $region65: #{tpu_custom_call.1} parent=63 // pred_check
        %p1320 = pneg %p278
      $region66: #{tpu_custom_call.1} parent=63 // pred_check_branch
        %1322 = sbr.rel (%p1320) target = $region68
      $region67: #{tpu_custom_call.1} parent=63 // pred_region
        %s1323 = smul.u32 19, %s24
      $region68: #{tpu_custom_call.1} parent=63 // pred_fallthru
        _
    $region64: #{tpu_custom_call.1} parent=5 // pred_fallthru
      _
    %p1324 = scmp.le.s32.totalorder 2, %s19
    // Predicated region
    $region69: #{tpu_custom_call.1} parent=5 // pred_check
      %p1325 = pneg %p1324
    $region70: #{tpu_custom_call.1} parent=5 // pred_check_branch
      %1327 = sbr.rel (%p1325) target = $region72
    $region71: #{tpu_custom_call.1} parent=5 // pred_region
      %s1328 = ssub.s32 %s19, 2
      // Predicated region
      $region73: #{tpu_custom_call.1} parent=71 // pred_check
        %p1329 = pneg %p284
      $region74: #{tpu_custom_call.1} parent=71 // pred_check_branch
        %1331 = sbr.rel (%p1329) target = $region76
      $region75: #{tpu_custom_call.1} parent=71 // pred_region
        %s1332 = smul.u32 19, %s25
        %p1333 = scmp.lt.s32.totalorder %s1332, 37
        %s1334 = scalar_select %p1333, %s1332, 37
        %s1335 = smul.addr %s1334, 8
        %s1336 = scalar_lea.vmem %s11, %s1335
      $region76: #{tpu_custom_call.1} parent=71 // pred_fallthru
        _
    $region72: #{tpu_custom_call.1} parent=5 // pred_fallthru
      _
  $region6: #{tpu_custom_call.1} parent=0 // loop_footer
    %s23 = sadd.s32 1, %s19
  $region7: #{tpu_custom_call.1} parent=0 // loop_footer_branch
    %18 = sbr.rel target = $region3
  $region8: #{tpu_custom_call.1} parent=0 // loop_exit
    _

</llo_original>
